<compile_context>
chip_gen: v7x
topology: tpu7x:2x2x1
jax: 0.10.0
libtpu: 0.0.40
codegen_flags: <defaults>
</compile_context>

<pallas_src>
import functools

import jax
import jax.numpy as jnp
import numpy as np
from jax.experimental import pallas as pl
from jax.experimental.pallas import tpu as pltpu


# ----------------------------- Pallas kernels ------------------------------ #

def _down_up_kernel(xps_ref, w1_ref, w2_ref, y_ref, sums_ref,
                    p1_scr, hp_scr, p2_scr, *, Ho, Wo, Cin, Cmid):
    """Fused LeakyReLU -> Conv4x4/s2 -> ReLU -> ConvT4x4/s2 for one image.

    xps_ref : (4, Ho+1, Wo+1, Cin)   parity-split, zero-padded NHWC input,
              xps[2*r+s, a, b, c] == x_pad[2*a+r, 2*b+s, c]
    w1_ref  : (16*Cin, Cmid)  bf16   down-conv weight, row = (kh*4+kw)*Cin + ci
    w2_ref  : (9*Cmid, 4*Cout) bf16  phase-unified transposed-conv weight
    y_ref   : (1, Ho*Wo, 4*Cout)     up-conv output, column = (2*pi+pj)*Cout + o
    sums_ref: (1, 2, 4*Cout)         per-image [sum; sum of squares] for BatchNorm
    """
    M = Ho * Wo

    # --- down path: LeakyReLU(0.2) + build the 16 shifted views in VMEM (no HBM im2col) ---
    for r in range(2):
        for s in range(2):
            v = xps_ref[2 * r + s]                          # (Ho+1, Wo+1, Cin)
            v = jnp.where(v > 0, v, 0.2 * v)                # LeakyReLU(0.2); lrelu(0)=0
            for a in range(2):
                for b in range(2):
                    kh, kw = 2 * a + r, 2 * b + s
                    col = (kh * 4 + kw) * Cin
                    p1_scr[:, :, col:col + Cin] = v[a:a + Ho, b:b + Wo, :]
    p1 = p1_scr[...].reshape(M, 16 * Cin).astype(jnp.bfloat16)
    h = jnp.dot(p1, w1_ref[...], preferred_element_type=jnp.float32)      # (M, Cmid) f32

    # --- up path: ReLU, zero halo in VMEM, 3x3 patch, phase-unified transposed conv ---
    hp_scr[...] = jnp.zeros((Ho + 2, Wo + 2, Cmid), jnp.float32)
    hp_scr[1:Ho + 1, 1:Wo + 1, :] = jnp.maximum(h, 0.0).reshape(Ho, Wo, Cmid)
    for da in range(3):
        for db in range(3):
            col = (da * 3 + db) * Cmid
            p2_scr[:, :, col:col + Cmid] = hp_scr[da:da + Ho, db:db + Wo, :]
    p2 = p2_scr[...].reshape(M, 9 * Cmid).astype(jnp.bfloat16)
    y = jnp.dot(p2, w2_ref[...], preferred_element_type=jnp.float32)      # (M, 4*Cout) f32

    y_ref[0] = y
    # per-image BatchNorm partial sums (finalized cheaply in the wrapper)
    sums_ref[0, 0:1, :] = jnp.sum(y, axis=0, keepdims=True)
    sums_ref[0, 1:2, :] = jnp.sum(y * y, axis=0, keepdims=True)


def _bn_concat_kernel(x_ref, y_ref, scale_ref, shift_ref, o_ref, *, Cin):
    """Fused BN-apply + channel concat, lane-dense (last dim = H*W)."""
    o_ref[0, :Cin, :] = x_ref[0]
    o_ref[0, Cin:, :] = y_ref[0] * scale_ref[0] + shift_ref[0]


# ------------------------------- JAX wrapper -------------------------------- #

def unet_innermost_forward(x, params):
    N, Cin, H, W = x.shape
    assert H % 2 == 0 and W % 2 == 0
    Cmid = params["w_down"].shape[0]          # inner_nc
    Cout = params["w_up"].shape[1]            # outer_nc
    Ho, Wo = H // 2, W // 2
    Hh, Wh = Ho + 1, Wo + 1
    M = Ho * Wo

    # parity-split, zero-padded NHWC input (pure raw-size layout op; replaces HBM im2col)
    xp = jnp.pad(x, ((0, 0), (0, 0), (1, 1), (1, 1))).transpose(0, 2, 3, 1)   # (N,H+2,W+2,C)
    xps = (xp.reshape(N, Hh, 2, Wh, 2, Cin)
             .transpose(0, 2, 4, 1, 3, 5)
             .reshape(N * 4, Hh, Wh, Cin))                                    # [4n+2r+s,a,b,c]

    # down-conv weight OIHW -> (16*Cin, Cmid), row = (kh*4+kw)*Cin + ci, bf16 MXU operand
    w1 = (params["w_down"].transpose(2, 3, 1, 0)
          .reshape(16 * Cin, Cmid).astype(jnp.bfloat16))

    # transposed-conv weight, phase-unified 3x3 form: (9*Cmid, 4*Cout)
    #   w2[(da*3+db)*Cmid + c, (2*pi+pj)*Cout + o] = w_up[c, o, kh, kw]
    #   with kh = 3 + pi - 2*da, kw = 3 + pj - 2*db (zero where out of kernel range).
    w_up = params["w_up"]
    w2 = jnp.zeros((9 * Cmid, 4 * Cout), jnp.float32)
    for da in range(3):
        for db in range(3):
            for pi in range(2):
                for pj in range(2):
                    kh = 3 + pi - 2 * da
                    kw = 3 + pj - 2 * db
                    if 0 <= kh < 4 and 0 <= kw < 4:
                        w2 = w2.at[(da * 3 + db) * Cmid:(da * 3 + db + 1) * Cmid,
                                   (2 * pi + pj) * Cout:(2 * pi + pj + 1) * Cout
                                   ].set(w_up[:, :, kh, kw])
    w2 = w2.astype(jnp.bfloat16)

    # ---- fused down+up kernel; grid over batch ("parallel": feeds both v7x TCs) ----
    y_flat, psums = pl.pallas_call(
        functools.partial(_down_up_kernel, Ho=Ho, Wo=Wo, Cin=Cin, Cmid=Cmid),
        out_shape=(jax.ShapeDtypeStruct((N, M, 4 * Cout), jnp.float32),
                   jax.ShapeDtypeStruct((N, 2, 4 * Cout), jnp.float32)),
        grid_spec=pltpu.PrefetchScalarGridSpec(
            num_scalar_prefetch=0,
            grid=(N,),
            in_specs=[
                pl.BlockSpec((4, Hh, Wh, Cin), lambda n: (n, 0, 0, 0)),
                pl.BlockSpec((16 * Cin, Cmid), lambda n: (0, 0)),
                pl.BlockSpec((9 * Cmid, 4 * Cout), lambda n: (0, 0)),
            ],
            out_specs=(
                pl.BlockSpec((1, M, 4 * Cout), lambda n: (n, 0, 0)),
                pl.BlockSpec((1, 2, 4 * Cout), lambda n: (n, 0, 0)),
            ),
            scratch_shapes=[
                pltpu.VMEM((Ho, Wo, 16 * Cin), jnp.float32),      # down-conv patches
                pltpu.VMEM((Ho + 2, Wo + 2, Cmid), jnp.float32),  # ReLU(h) with zero halo
                pltpu.VMEM((Ho, Wo, 9 * Cmid), jnp.float32),      # up-conv 3x3 patches
            ],
        ),
        compiler_params=pltpu.CompilerParams(dimension_semantics=("parallel",)),
    )(xps, w1, w2)

    # ---- finalize BatchNorm batch statistics (training mode, biased var, eps=1e-5) ----
    cnt = N * H * W
    ps = psums.reshape(N, 2, 4, Cout).sum(axis=(0, 2))            # (2, Cout)
    mean = ps[0] / cnt
    var = ps[1] / cnt - mean * mean
    scale = params["bn_gamma"] * jax.lax.rsqrt(var + 1e-5)
    shift = params["bn_beta"] - mean * scale

    # de-interleave the phase-major up-conv output to NCHW (raw-size layout op)
    # TODO(synk): could be folded into the epilogue kernel with strided in-kernel stores.
    y_nchw = (y_flat.reshape(N, Ho, Wo, 2, 2, Cout)
              .transpose(0, 5, 1, 3, 2, 4)
              .reshape(N, Cout, H, W))

    # ---- fused BN-apply + channel-concat epilogue, lane-dense (last dim = H*W) ----
    out2d = pl.pallas_call(
        functools.partial(_bn_concat_kernel, Cin=Cin),
        out_shape=jax.ShapeDtypeStruct((N, Cin + Cout, H * W), x.dtype),
        grid_spec=pltpu.PrefetchScalarGridSpec(
            num_scalar_prefetch=0,
            grid=(N,),
            in_specs=[
                pl.BlockSpec((1, Cin, H * W), lambda n: (n, 0, 0)),
                pl.BlockSpec((1, Cout, H * W), lambda n: (n, 0, 0)),
                pl.BlockSpec((1, Cout, 1), lambda n: (0, 0, 0)),
                pl.BlockSpec((1, Cout, 1), lambda n: (0, 0, 0)),
            ],
            out_specs=pl.BlockSpec((1, Cin + Cout, H * W), lambda n: (n, 0, 0)),
        ),
        compiler_params=pltpu.CompilerParams(dimension_semantics=("parallel",)),
    )(x.reshape(N, Cin, H * W), y_nchw.reshape(N, Cout, H * W),
      scale.reshape(1, Cout, 1), shift.reshape(1, Cout, 1))
    return out2d.reshape(N, Cin + Cout, H, W)


# ----------------------------- reference (lax) ------------------------------ #

def reference(x, params, operand_dtype=jnp.float32):
    """Pure-lax reference. operand_dtype=bf16 mirrors the kernel's MXU operand dtype."""
    cast = lambda a: a.astype(operand_dtype)
    lrelu = jnp.where(x > 0, x, 0.2 * x)
    h = jax.lax.conv_general_dilated(
        cast(lrelu), cast(params["w_down"]), (2, 2), [(1, 1), (1, 1)],
        dimension_numbers=("NCHW", "OIHW", "NCHW"),
        preferred_element_type=jnp.float32,
        precision=jax.lax.Precision.HIGHEST)
    r = jnp.maximum(h, 0.0)
    w2 = params["w_up"].transpose(1, 0, 2, 3)[:, :, ::-1, ::-1]
    y = jax.lax.conv_general_dilated(
        cast(r), cast(w2), (1, 1), [(2, 2), (2, 2)], lhs_dilation=(2, 2),
        dimension_numbers=("NCHW", "OIHW", "NCHW"),
        preferred_element_type=jnp.float32,
        precision=jax.lax.Precision.HIGHEST)
    mean = y.mean(axis=(0, 2, 3), keepdims=True)
    var = y.var(axis=(0, 2, 3), keepdims=True)
    yn = (y - mean) * jax.lax.rsqrt(var + 1e-5)
    yn = yn * params["bn_gamma"].reshape(1, -1, 1, 1) + params["bn_beta"].reshape(1, -1, 1, 1)
    return jnp.concatenate([x, yn], axis=1)


# --------------------------------- main ------------------------------------ #

if __name__ == "__main__":
    key = jax.random.PRNGKey(0)
    k1, k2, k3, k4, k5 = jax.random.split(key, 5)

    N, outer_nc, inner_nc, H, W = 2, 4, 8, 16, 16

    x = jax.random.normal(k1, (N, outer_nc, H, W), jnp.float32)
    params = {
        # Conv2d(input_nc=outer_nc, inner_nc, 4, 4) weight: (inner_nc, outer_nc, 4, 4)
        "w_down": 0.05 * jax.random.normal(k2, (inner_nc, outer_nc, 4, 4), jnp.float32),
        # ConvTranspose2d(inner_nc, outer_nc, 4, 4) weight: (inner_nc, outer_nc, 4, 4)
        "w_up": 0.05 * jax.random.normal(k3, (inner_nc, outer_nc, 4, 4), jnp.float32),
        # BatchNorm2d(outer_nc) affine params
        "bn_gamma": 1.0 + 0.1 * jax.random.normal(k4, (outer_nc,), jnp.float32),
        "bn_beta": 0.1 * jax.random.normal(k5, (outer_nc,), jnp.float32),
    }

    out = jax.block_until_ready(jax.jit(unet_innermost_forward)(x, params))
    assert out.shape == (N, 2 * outer_nc, H, W)

    # tight check vs a reference matched to the kernel's bf16-operand / f32-accumulate MXU
    ref_bf16 = reference(x, params, operand_dtype=jnp.bfloat16)
    np.testing.assert_allclose(np.asarray(out), np.asarray(ref_bf16), rtol=5e-3, atol=5e-3)
    # loose check vs the full-f32 semantics of the PyTorch module
    ref_f32 = reference(x, params, operand_dtype=jnp.float32)
    np.testing.assert_allclose(np.asarray(out), np.asarray(ref_f32), rtol=3e-2, atol=3e-2)

    print("KERNEL_OK")
</pallas_src>

<mosaic_0001>
module attributes {stable_mosaic.version = 11 : i64} {
  func.func @_down_up_kernel(%arg0: i32, %arg1: memref<4x9x9x4xf32, #tpu.memory_space<vmem>>, %arg2: memref<64x8xbf16, #tpu.memory_space<vmem>>, %arg3: memref<72x16xbf16, #tpu.memory_space<vmem>>, %arg4: memref<1x64x16xf32, #tpu.memory_space<vmem>>, %arg5: memref<1x2x16xf32, #tpu.memory_space<vmem>>, %arg6: memref<8x8x64xf32, #tpu.memory_space<vmem>>, %arg7: memref<10x10x8xf32, #tpu.memory_space<vmem>>, %arg8: memref<8x8x72xf32, #tpu.memory_space<vmem>>) attributes {dimension_semantics = [#tpu.dimension_semantics<parallel>], iteration_bounds = array<i64: 2>, scalar_prefetch = 0 : i64, scratch_operands = 3 : i64, tpu.core_type = #tpu.core_type<tc>, window_params = [{transform_indices = @transform_0, window_bounds = array<i64: 4, 9, 9, 4>}, {pipeline_mode = #tpu.pipeline_mode<synchronous>, transform_indices = @transform_1, window_bounds = array<i64: 64, 8>}, {pipeline_mode = #tpu.pipeline_mode<synchronous>, transform_indices = @transform_2, window_bounds = array<i64: 72, 16>}, {transform_indices = @transform_3, window_bounds = array<i64: 1, 64, 16>}, {transform_indices = @transform_4, window_bounds = array<i64: 1, 2, 16>}]} {
    %c0 = arith.constant 0 : index
    %c0_0 = arith.constant 0 : index
    %c0_1 = arith.constant 0 : index
    %c0_2 = arith.constant 0 : index
    %0 = vector.load %arg1[%c0, %c0_0, %c0_1, %c0_2] : memref<4x9x9x4xf32, #tpu.memory_space<vmem>>, vector<1x9x9x4xf32>
    %1 = vector.shape_cast %0 : vector<1x9x9x4xf32> to vector<9x9x4xf32>
    %cst = arith.constant 0.000000e+00 : f32
    %2 = vector.broadcast %cst : f32 to vector<9x9x4xf32>
    %3 = arith.cmpf ogt, %1, %2 : vector<9x9x4xf32>
    %cst_3 = arith.constant 2.000000e-01 : f32
    %4 = vector.broadcast %cst_3 : f32 to vector<9x9x4xf32>
    %5 = arith.mulf %4, %1 : vector<9x9x4xf32>
    %6 = arith.select %3, %1, %5 : vector<9x9x4xi1>, vector<9x9x4xf32>
    %7 = vector.extract_strided_slice %6 {offsets = [0, 0, 0], sizes = [8, 8, 4], strides = [1, 1, 1]} : vector<9x9x4xf32> to vector<8x8x4xf32>
    %c0_4 = arith.constant 0 : index
    %c0_5 = arith.constant 0 : index
    %c0_6 = arith.constant 0 : index
    %8 = vector.load %arg6[%c0_4, %c0_5, %c0_6] : memref<8x8x64xf32, #tpu.memory_space<vmem>>, vector<8x8x4xf32>
    tpu.vector_store %arg6[%c0_4, %c0_5, %c0_6], %7 {strides = array<i32>} : memref<8x8x64xf32, #tpu.memory_space<vmem>>, vector<8x8x4xf32>,
    %9 = vector.extract_strided_slice %6 {offsets = [0, 1, 0], sizes = [8, 8, 4], strides = [1, 1, 1]} : vector<9x9x4xf32> to vector<8x8x4xf32>
    %c0_7 = arith.constant 0 : index
    %c0_8 = arith.constant 0 : index
    %c8 = arith.constant 8 : index
    %10 = vector.load %arg6[%c0_7, %c0_8, %c8] : memref<8x8x64xf32, #tpu.memory_space<vmem>>, vector<8x8x4xf32>
    tpu.vector_store %arg6[%c0_7, %c0_8, %c8], %9 {strides = array<i32>} : memref<8x8x64xf32, #tpu.memory_space<vmem>>, vector<8x8x4xf32>,
    %11 = vector.extract_strided_slice %6 {offsets = [1, 0, 0], sizes = [8, 8, 4], strides = [1, 1, 1]} : vector<9x9x4xf32> to vector<8x8x4xf32>
    %c0_9 = arith.constant 0 : index
    %c0_10 = arith.constant 0 : index
    %c32 = arith.constant 32 : index
    %12 = vector.load %arg6[%c0_9, %c0_10, %c32] : memref<8x8x64xf32, #tpu.memory_space<vmem>>, vector<8x8x4xf32>
    tpu.vector_store %arg6[%c0_9, %c0_10, %c32], %11 {strides = array<i32>} : memref<8x8x64xf32, #tpu.memory_space<vmem>>, vector<8x8x4xf32>,
    %13 = vector.extract_strided_slice %6 {offsets = [1, 1, 0], sizes = [8, 8, 4], strides = [1, 1, 1]} : vector<9x9x4xf32> to vector<8x8x4xf32>
    %c0_11 = arith.constant 0 : index
    %c0_12 = arith.constant 0 : index
    %c40 = arith.constant 40 : index
    %14 = vector.load %arg6[%c0_11, %c0_12, %c40] : memref<8x8x64xf32, #tpu.memory_space<vmem>>, vector<8x8x4xf32>
    tpu.vector_store %arg6[%c0_11, %c0_12, %c40], %13 {strides = array<i32>} : memref<8x8x64xf32, #tpu.memory_space<vmem>>, vector<8x8x4xf32>,
    %c1 = arith.constant 1 : index
    %c0_13 = arith.constant 0 : index
    %c0_14 = arith.constant 0 : index
    %c0_15 = arith.constant 0 : index
    %15 = vector.load %arg1[%c1, %c0_13, %c0_14, %c0_15] : memref<4x9x9x4xf32, #tpu.memory_space<vmem>>, vector<1x9x9x4xf32>
    %16 = vector.shape_cast %15 : vector<1x9x9x4xf32> to vector<9x9x4xf32>
    %cst_16 = arith.constant 0.000000e+00 : f32
    %17 = vector.broadcast %cst_16 : f32 to vector<9x9x4xf32>
    %18 = arith.cmpf ogt, %16, %17 : vector<9x9x4xf32>
    %cst_17 = arith.constant 2.000000e-01 : f32
    %19 = vector.broadcast %cst_17 : f32 to vector<9x9x4xf32>
    %20 = arith.mulf %19, %16 : vector<9x9x4xf32>
    %21 = arith.select %18, %16, %20 : vector<9x9x4xi1>, vector<9x9x4xf32>
    %22 = vector.extract_strided_slice %21 {offsets = [0, 0, 0], sizes = [8, 8, 4], strides = [1, 1, 1]} : vector<9x9x4xf32> to vector<8x8x4xf32>
    %c0_18 = arith.constant 0 : index
    %c0_19 = arith.constant 0 : index
    %c4 = arith.constant 4 : index
    %23 = vector.load %arg6[%c0_18, %c0_19, %c4] : memref<8x8x64xf32, #tpu.memory_space<vmem>>, vector<8x8x4xf32>
    tpu.vector_store %arg6[%c0_18, %c0_19, %c4], %22 {strides = array<i32>} : memref<8x8x64xf32, #tpu.memory_space<vmem>>, vector<8x8x4xf32>,
    %24 = vector.extract_strided_slice %21 {offsets = [0, 1, 0], sizes = [8, 8, 4], strides = [1, 1, 1]} : vector<9x9x4xf32> to vector<8x8x4xf32>
    %c0_20 = arith.constant 0 : index
    %c0_21 = arith.constant 0 : index
    %c12 = arith.constant 12 : index
    %25 = vector.load %arg6[%c0_20, %c0_21, %c12] : memref<8x8x64xf32, #tpu.memory_space<vmem>>, vector<8x8x4xf32>
    tpu.vector_store %arg6[%c0_20, %c0_21, %c12], %24 {strides = array<i32>} : memref<8x8x64xf32, #tpu.memory_space<vmem>>, vector<8x8x4xf32>,
    %26 = vector.extract_strided_slice %21 {offsets = [1, 0, 0], sizes = [8, 8, 4], strides = [1, 1, 1]} : vector<9x9x4xf32> to vector<8x8x4xf32>
    %c0_22 = arith.constant 0 : index
    %c0_23 = arith.constant 0 : index
    %c36 = arith.constant 36 : index
    %27 = vector.load %arg6[%c0_22, %c0_23, %c36] : memref<8x8x64xf32, #tpu.memory_space<vmem>>, vector<8x8x4xf32>
    tpu.vector_store %arg6[%c0_22, %c0_23, %c36], %26 {strides = array<i32>} : memref<8x8x64xf32, #tpu.memory_space<vmem>>, vector<8x8x4xf32>,
    %28 = vector.extract_strided_slice %21 {offsets = [1, 1, 0], sizes = [8, 8, 4], strides = [1, 1, 1]} : vector<9x9x4xf32> to vector<8x8x4xf32>
    %c0_24 = arith.constant 0 : index
    %c0_25 = arith.constant 0 : index
    %c44 = arith.constant 44 : index
    %29 = vector.load %arg6[%c0_24, %c0_25, %c44] : memref<8x8x64xf32, #tpu.memory_space<vmem>>, vector<8x8x4xf32>
    tpu.vector_store %arg6[%c0_24, %c0_25, %c44], %28 {strides = array<i32>} : memref<8x8x64xf32, #tpu.memory_space<vmem>>, vector<8x8x4xf32>,
    %c2 = arith.constant 2 : index
    %c0_26 = arith.constant 0 : index
    %c0_27 = arith.constant 0 : index
    %c0_28 = arith.constant 0 : index
    %30 = vector.load %arg1[%c2, %c0_26, %c0_27, %c0_28] : memref<4x9x9x4xf32, #tpu.memory_space<vmem>>, vector<1x9x9x4xf32>
    %31 = vector.shape_cast %30 : vector<1x9x9x4xf32> to vector<9x9x4xf32>
    %cst_29 = arith.constant 0.000000e+00 : f32
    %32 = vector.broadcast %cst_29 : f32 to vector<9x9x4xf32>
    %33 = arith.cmpf ogt, %31, %32 : vector<9x9x4xf32>
    %cst_30 = arith.constant 2.000000e-01 : f32
    %34 = vector.broadcast %cst_30 : f32 to vector<9x9x4xf32>
    %35 = arith.mulf %34, %31 : vector<9x9x4xf32>
    %36 = arith.select %33, %31, %35 : vector<9x9x4xi1>, vector<9x9x4xf32>
    %37 = vector.extract_strided_slice %36 {offsets = [0, 0, 0], sizes = [8, 8, 4], strides = [1, 1, 1]} : vector<9x9x4xf32> to vector<8x8x4xf32>
    %c0_31 = arith.constant 0 : index
    %c0_32 = arith.constant 0 : index
    %c16 = arith.constant 16 : index
    %38 = vector.load %arg6[%c0_31, %c0_32, %c16] : memref<8x8x64xf32, #tpu.memory_space<vmem>>, vector<8x8x4xf32>
    tpu.vector_store %arg6[%c0_31, %c0_32, %c16], %37 {strides = array<i32>} : memref<8x8x64xf32, #tpu.memory_space<vmem>>, vector<8x8x4xf32>,
    %39 = vector.extract_strided_slice %36 {offsets = [0, 1, 0], sizes = [8, 8, 4], strides = [1, 1, 1]} : vector<9x9x4xf32> to vector<8x8x4xf32>
    %c0_33 = arith.constant 0 : index
    %c0_34 = arith.constant 0 : index
    %c24 = arith.constant 24 : index
    %40 = vector.load %arg6[%c0_33, %c0_34, %c24] : memref<8x8x64xf32, #tpu.memory_space<vmem>>, vector<8x8x4xf32>
    tpu.vector_store %arg6[%c0_33, %c0_34, %c24], %39 {strides = array<i32>} : memref<8x8x64xf32, #tpu.memory_space<vmem>>, vector<8x8x4xf32>,
    %41 = vector.extract_strided_slice %36 {offsets = [1, 0, 0], sizes = [8, 8, 4], strides = [1, 1, 1]} : vector<9x9x4xf32> to vector<8x8x4xf32>
    %c0_35 = arith.constant 0 : index
    %c0_36 = arith.constant 0 : index
    %c48 = arith.constant 48 : index
    %42 = vector.load %arg6[%c0_35, %c0_36, %c48] : memref<8x8x64xf32, #tpu.memory_space<vmem>>, vector<8x8x4xf32>
    tpu.vector_store %arg6[%c0_35, %c0_36, %c48], %41 {strides = array<i32>} : memref<8x8x64xf32, #tpu.memory_space<vmem>>, vector<8x8x4xf32>,
    %43 = vector.extract_strided_slice %36 {offsets = [1, 1, 0], sizes = [8, 8, 4], strides = [1, 1, 1]} : vector<9x9x4xf32> to vector<8x8x4xf32>
    %c0_37 = arith.constant 0 : index
    %c0_38 = arith.constant 0 : index
    %c56 = arith.constant 56 : index
    %44 = vector.load %arg6[%c0_37, %c0_38, %c56] : memref<8x8x64xf32, #tpu.memory_space<vmem>>, vector<8x8x4xf32>
    tpu.vector_store %arg6[%c0_37, %c0_38, %c56], %43 {strides = array<i32>} : memref<8x8x64xf32, #tpu.memory_space<vmem>>, vector<8x8x4xf32>,
    %c3 = arith.constant 3 : index
    %c0_39 = arith.constant 0 : index
    %c0_40 = arith.constant 0 : index
    %c0_41 = arith.constant 0 : index
    %45 = vector.load %arg1[%c3, %c0_39, %c0_40, %c0_41] : memref<4x9x9x4xf32, #tpu.memory_space<vmem>>, vector<1x9x9x4xf32>
    %46 = vector.shape_cast %45 : vector<1x9x9x4xf32> to vector<9x9x4xf32>
    %cst_42 = arith.constant 0.000000e+00 : f32
    %47 = vector.broadcast %cst_42 : f32 to vector<9x9x4xf32>
    %48 = arith.cmpf ogt, %46, %47 : vector<9x9x4xf32>
    %cst_43 = arith.constant 2.000000e-01 : f32
    %49 = vector.broadcast %cst_43 : f32 to vector<9x9x4xf32>
    %50 = arith.mulf %49, %46 : vector<9x9x4xf32>
    %51 = arith.select %48, %46, %50 : vector<9x9x4xi1>, vector<9x9x4xf32>
    %52 = vector.extract_strided_slice %51 {offsets = [0, 0, 0], sizes = [8, 8, 4], strides = [1, 1, 1]} : vector<9x9x4xf32> to vector<8x8x4xf32>
    %c0_44 = arith.constant 0 : index
    %c0_45 = arith.constant 0 : index
    %c20 = arith.constant 20 : index
    %53 = vector.load %arg6[%c0_44, %c0_45, %c20] : memref<8x8x64xf32, #tpu.memory_space<vmem>>, vector<8x8x4xf32>
    tpu.vector_store %arg6[%c0_44, %c0_45, %c20], %52 {strides = array<i32>} : memref<8x8x64xf32, #tpu.memory_space<vmem>>, vector<8x8x4xf32>,
    %54 = vector.extract_strided_slice %51 {offsets = [0, 1, 0], sizes = [8, 8, 4], strides = [1, 1, 1]} : vector<9x9x4xf32> to vector<8x8x4xf32>
    %c0_46 = arith.constant 0 : index
    %c0_47 = arith.constant 0 : index
    %c28 = arith.constant 28 : index
    %55 = vector.load %arg6[%c0_46, %c0_47, %c28] : memref<8x8x64xf32, #tpu.memory_space<vmem>>, vector<8x8x4xf32>
    tpu.vector_store %arg6[%c0_46, %c0_47, %c28], %54 {strides = array<i32>} : memref<8x8x64xf32, #tpu.memory_space<vmem>>, vector<8x8x4xf32>,
    %56 = vector.extract_strided_slice %51 {offsets = [1, 0, 0], sizes = [8, 8, 4], strides = [1, 1, 1]} : vector<9x9x4xf32> to vector<8x8x4xf32>
    %c0_48 = arith.constant 0 : index
    %c0_49 = arith.constant 0 : index
    %c52 = arith.constant 52 : index
    %57 = vector.load %arg6[%c0_48, %c0_49, %c52] : memref<8x8x64xf32, #tpu.memory_space<vmem>>, vector<8x8x4xf32>
    tpu.vector_store %arg6[%c0_48, %c0_49, %c52], %56 {strides = array<i32>} : memref<8x8x64xf32, #tpu.memory_space<vmem>>, vector<8x8x4xf32>,
    %58 = vector.extract_strided_slice %51 {offsets = [1, 1, 0], sizes = [8, 8, 4], strides = [1, 1, 1]} : vector<9x9x4xf32> to vector<8x8x4xf32>
    %c0_50 = arith.constant 0 : index
    %c0_51 = arith.constant 0 : index
    %c60 = arith.constant 60 : index
    %59 = vector.load %arg6[%c0_50, %c0_51, %c60] : memref<8x8x64xf32, #tpu.memory_space<vmem>>, vector<8x8x4xf32>
    tpu.vector_store %arg6[%c0_50, %c0_51, %c60], %58 {strides = array<i32>} : memref<8x8x64xf32, #tpu.memory_space<vmem>>, vector<8x8x4xf32>,
    %c0_52 = arith.constant 0 : index
    %c0_53 = arith.constant 0 : index
    %c0_54 = arith.constant 0 : index
    %60 = vector.load %arg6[%c0_52, %c0_53, %c0_54] : memref<8x8x64xf32, #tpu.memory_space<vmem>>, vector<8x8x64xf32>
    %61 = vector.shape_cast %60 : vector<8x8x64xf32> to vector<64x64xf32>
    %62 = arith.truncf %61 : vector<64x64xf32> to vector<64x64xbf16>
    %c0_55 = arith.constant 0 : index
    %c0_56 = arith.constant 0 : index
    %63 = vector.load %arg2[%c0_55, %c0_56] : memref<64x8xbf16, #tpu.memory_space<vmem>>, vector<64x8xbf16>
    %cst_57 = arith.constant dense<0.000000e+00> : vector<64x8xf32>
    %64 = tpu.matmul %62, %63, %cst_57 {dimension_numbers = #tpu.dot_dimension_numbers<[1], [0], [0], [1], [0, 0, 1, 1], [], []>} : vector<64x64xbf16>, vector<64x8xbf16>, vector<64x8xf32> -> vector<64x8xf32>
    %cst_58 = arith.constant 0.000000e+00 : f32
    %65 = vector.broadcast %cst_58 : f32 to vector<10x10x8xf32>
    %c0_59 = arith.constant 0 : index
    %c0_60 = arith.constant 0 : index
    %c0_61 = arith.constant 0 : index
    %66 = vector.load %arg7[%c0_59, %c0_60, %c0_61] : memref<10x10x8xf32, #tpu.memory_space<vmem>>, vector<10x10x8xf32>
    tpu.vector_store %arg7[%c0_59, %c0_60, %c0_61], %65 {strides = array<i32>} : memref<10x10x8xf32, #tpu.memory_space<vmem>>, vector<10x10x8xf32>,
    %cst_62 = arith.constant 0.000000e+00 : f32
    %67 = vector.broadcast %cst_62 : f32 to vector<64x8xf32>
    %68 = arith.maximumf %64, %67 : vector<64x8xf32>
    %69 = vector.shape_cast %68 : vector<64x8xf32> to vector<8x8x8xf32>
    %c1_63 = arith.constant 1 : index
    %c1_64 = arith.constant 1 : index
    %c0_65 = arith.constant 0 : index
    %70 = vector.load %arg7[%c1_63, %c1_64, %c0_65] : memref<10x10x8xf32, #tpu.memory_space<vmem>>, vector<8x8x8xf32>
    tpu.vector_store %arg7[%c1_63, %c1_64, %c0_65], %69 {strides = array<i32>} : memref<10x10x8xf32, #tpu.memory_space<vmem>>, vector<8x8x8xf32>,
    %c0_66 = arith.constant 0 : index
    %c0_67 = arith.constant 0 : index
    %c0_68 = arith.constant 0 : index
    %71 = vector.load %arg7[%c0_66, %c0_67, %c0_68] : memref<10x10x8xf32, #tpu.memory_space<vmem>>, vector<8x8x8xf32>
    %c0_69 = arith.constant 0 : index
    %c0_70 = arith.constant 0 : index
    %c0_71 = arith.constant 0 : index
    %72 = vector.load %arg8[%c0_69, %c0_70, %c0_71] : memref<8x8x72xf32, #tpu.memory_space<vmem>>, vector<8x8x8xf32>
    tpu.vector_store %arg8[%c0_69, %c0_70, %c0_71], %71 {strides = array<i32>} : memref<8x8x72xf32, #tpu.memory_space<vmem>>, vector<8x8x8xf32>,
    %c0_72 = arith.constant 0 : index
    %c1_73 = arith.constant 1 : index
    %c0_74 = arith.constant 0 : index
    %73 = vector.load %arg7[%c0_72, %c1_73, %c0_74] : memref<10x10x8xf32, #tpu.memory_space<vmem>>, vector<8x8x8xf32>
    %c0_75 = arith.constant 0 : index
    %c0_76 = arith.constant 0 : index
    %c8_77 = arith.constant 8 : index
    %74 = vector.load %arg8[%c0_75, %c0_76, %c8_77] : memref<8x8x72xf32, #tpu.memory_space<vmem>>, vector<8x8x8xf32>
    tpu.vector_store %arg8[%c0_75, %c0_76, %c8_77], %73 {strides = array<i32>} : memref<8x8x72xf32, #tpu.memory_space<vmem>>, vector<8x8x8xf32>,
    %c0_78 = arith.constant 0 : index
    %c2_79 = arith.constant 2 : index
    %c0_80 = arith.constant 0 : index
    %75 = vector.load %arg7[%c0_78, %c2_79, %c0_80] : memref<10x10x8xf32, #tpu.memory_space<vmem>>, vector<8x8x8xf32>
    %c0_81 = arith.constant 0 : index
    %c0_82 = arith.constant 0 : index
    %c16_83 = arith.constant 16 : index
    %76 = vector.load %arg8[%c0_81, %c0_82, %c16_83] : memref<8x8x72xf32, #tpu.memory_space<vmem>>, vector<8x8x8xf32>
    tpu.vector_store %arg8[%c0_81, %c0_82, %c16_83], %75 {strides = array<i32>} : memref<8x8x72xf32, #tpu.memory_space<vmem>>, vector<8x8x8xf32>,
    %c1_84 = arith.constant 1 : index
    %c0_85 = arith.constant 0 : index
    %c0_86 = arith.constant 0 : index
    %77 = vector.load %arg7[%c1_84, %c0_85, %c0_86] : memref<10x10x8xf32, #tpu.memory_space<vmem>>, vector<8x8x8xf32>
    %c0_87 = arith.constant 0 : index
    %c0_88 = arith.constant 0 : index
    %c24_89 = arith.constant 24 : index
    %78 = vector.load %arg8[%c0_87, %c0_88, %c24_89] : memref<8x8x72xf32, #tpu.memory_space<vmem>>, vector<8x8x8xf32>
    tpu.vector_store %arg8[%c0_87, %c0_88, %c24_89], %77 {strides = array<i32>} : memref<8x8x72xf32, #tpu.memory_space<vmem>>, vector<8x8x8xf32>,
    %c1_90 = arith.constant 1 : index
    %c1_91 = arith.constant 1 : index
    %c0_92 = arith.constant 0 : index
    %79 = vector.load %arg7[%c1_90, %c1_91, %c0_92] : memref<10x10x8xf32, #tpu.memory_space<vmem>>, vector<8x8x8xf32>
    %c0_93 = arith.constant 0 : index
    %c0_94 = arith.constant 0 : index
    %c32_95 = arith.constant 32 : index
    %80 = vector.load %arg8[%c0_93, %c0_94, %c32_95] : memref<8x8x72xf32, #tpu.memory_space<vmem>>, vector<8x8x8xf32>
    tpu.vector_store %arg8[%c0_93, %c0_94, %c32_95], %79 {strides = array<i32>} : memref<8x8x72xf32, #tpu.memory_space<vmem>>, vector<8x8x8xf32>,
    %c1_96 = arith.constant 1 : index
    %c2_97 = arith.constant 2 : index
    %c0_98 = arith.constant 0 : index
    %81 = vector.load %arg7[%c1_96, %c2_97, %c0_98] : memref<10x10x8xf32, #tpu.memory_space<vmem>>, vector<8x8x8xf32>
    %c0_99 = arith.constant 0 : index
    %c0_100 = arith.constant 0 : index
    %c40_101 = arith.constant 40 : index
    %82 = vector.load %arg8[%c0_99, %c0_100, %c40_101] : memref<8x8x72xf32, #tpu.memory_space<vmem>>, vector<8x8x8xf32>
    tpu.vector_store %arg8[%c0_99, %c0_100, %c40_101], %81 {strides = array<i32>} : memref<8x8x72xf32, #tpu.memory_space<vmem>>, vector<8x8x8xf32>,
    %c2_102 = arith.constant 2 : index
    %c0_103 = arith.constant 0 : index
    %c0_104 = arith.constant 0 : index
    %83 = vector.load %arg7[%c2_102, %c0_103, %c0_104] : memref<10x10x8xf32, #tpu.memory_space<vmem>>, vector<8x8x8xf32>
    %c0_105 = arith.constant 0 : index
    %c0_106 = arith.constant 0 : index
    %c48_107 = arith.constant 48 : index
    %84 = vector.load %arg8[%c0_105, %c0_106, %c48_107] : memref<8x8x72xf32, #tpu.memory_space<vmem>>, vector<8x8x8xf32>
    tpu.vector_store %arg8[%c0_105, %c0_106, %c48_107], %83 {strides = array<i32>} : memref<8x8x72xf32, #tpu.memory_space<vmem>>, vector<8x8x8xf32>,
    %c2_108 = arith.constant 2 : index
    %c1_109 = arith.constant 1 : index
    %c0_110 = arith.constant 0 : index
    %85 = vector.load %arg7[%c2_108, %c1_109, %c0_110] : memref<10x10x8xf32, #tpu.memory_space<vmem>>, vector<8x8x8xf32>
    %c0_111 = arith.constant 0 : index
    %c0_112 = arith.constant 0 : index
    %c56_113 = arith.constant 56 : index
    %86 = vector.load %arg8[%c0_111, %c0_112, %c56_113] : memref<8x8x72xf32, #tpu.memory_space<vmem>>, vector<8x8x8xf32>
    tpu.vector_store %arg8[%c0_111, %c0_112, %c56_113], %85 {strides = array<i32>} : memref<8x8x72xf32, #tpu.memory_space<vmem>>, vector<8x8x8xf32>,
    %c2_114 = arith.constant 2 : index
    %c2_115 = arith.constant 2 : index
    %c0_116 = arith.constant 0 : index
    %87 = vector.load %arg7[%c2_114, %c2_115, %c0_116] : memref<10x10x8xf32, #tpu.memory_space<vmem>>, vector<8x8x8xf32>
    %c0_117 = arith.constant 0 : index
    %c0_118 = arith.constant 0 : index
    %c64 = arith.constant 64 : index
    %88 = vector.load %arg8[%c0_117, %c0_118, %c64] : memref<8x8x72xf32, #tpu.memory_space<vmem>>, vector<8x8x8xf32>
    tpu.vector_store %arg8[%c0_117, %c0_118, %c64], %87 {strides = array<i32>} : memref<8x8x72xf32, #tpu.memory_space<vmem>>, vector<8x8x8xf32>,
    %c0_119 = arith.constant 0 : index
    %c0_120 = arith.constant 0 : index
    %c0_121 = arith.constant 0 : index
    %89 = vector.load %arg8[%c0_119, %c0_120, %c0_121] : memref<8x8x72xf32, #tpu.memory_space<vmem>>, vector<8x8x72xf32>
    %90 = vector.shape_cast %89 : vector<8x8x72xf32> to vector<64x72xf32>
    %91 = arith.truncf %90 : vector<64x72xf32> to vector<64x72xbf16>
    %c0_122 = arith.constant 0 : index
    %c0_123 = arith.constant 0 : index
    %92 = vector.load %arg3[%c0_122, %c0_123] : memref<72x16xbf16, #tpu.memory_space<vmem>>, vector<72x16xbf16>
    %cst_124 = arith.constant dense<0.000000e+00> : vector<64x16xf32>
    %93 = tpu.matmul %91, %92, %cst_124 {dimension_numbers = #tpu.dot_dimension_numbers<[1], [0], [0], [1], [0, 0, 1, 1], [], []>} : vector<64x72xbf16>, vector<72x16xbf16>, vector<64x16xf32> -> vector<64x16xf32>
    %c0_125 = arith.constant 0 : index
    %c0_126 = arith.constant 0 : index
    %c0_127 = arith.constant 0 : index
    %94 = vector.load %arg4[%c0_125, %c0_126, %c0_127] : memref<1x64x16xf32, #tpu.memory_space<vmem>>, vector<1x64x16xf32>
    %95 = vector.shape_cast %94 : vector<1x64x16xf32> to vector<64x16xf32>
    %96 = vector.shape_cast %93 : vector<64x16xf32> to vector<1x64x16xf32>
    tpu.vector_store %arg4[%c0_125, %c0_126, %c0_127], %96 {strides = array<i32>} : memref<1x64x16xf32, #tpu.memory_space<vmem>>, vector<1x64x16xf32>,
    %cst_128 = arith.constant dense<0.000000e+00> : vector<16xf32>
    %97 = vector.multi_reduction <add>, %93, %cst_128 [0] : vector<64x16xf32> to vector<16xf32>
    %98 = vector.shape_cast %97 : vector<16xf32> to vector<1x16xf32>
    %c0_129 = arith.constant 0 : index
    %c0_130 = arith.constant 0 : index
    %c0_131 = arith.constant 0 : index
    %99 = vector.load %arg5[%c0_129, %c0_130, %c0_131] : memref<1x2x16xf32, #tpu.memory_space<vmem>>, vector<1x1x16xf32>
    %100 = vector.shape_cast %99 : vector<1x1x16xf32> to vector<1x16xf32>
    %101 = vector.shape_cast %98 : vector<1x16xf32> to vector<1x1x16xf32>
    tpu.vector_store %arg5[%c0_129, %c0_130, %c0_131], %101 {strides = array<i32>} : memref<1x2x16xf32, #tpu.memory_space<vmem>>, vector<1x1x16xf32>,
    %102 = arith.mulf %93, %93 : vector<64x16xf32>
    %cst_132 = arith.constant dense<0.000000e+00> : vector<16xf32>
    %103 = vector.multi_reduction <add>, %102, %cst_132 [0] : vector<64x16xf32> to vector<16xf32>
    %104 = vector.shape_cast %103 : vector<16xf32> to vector<1x16xf32>
    %c0_133 = arith.constant 0 : index
    %c1_134 = arith.constant 1 : index
    %c0_135 = arith.constant 0 : index
    %105 = vector.load %arg5[%c0_133, %c1_134, %c0_135] : memref<1x2x16xf32, #tpu.memory_space<vmem>>, vector<1x1x16xf32>
    %106 = vector.shape_cast %105 : vector<1x1x16xf32> to vector<1x16xf32>
    %107 = vector.shape_cast %104 : vector<1x16xf32> to vector<1x1x16xf32>
    tpu.vector_store %arg5[%c0_133, %c1_134, %c0_135], %107 {strides = array<i32>} : memref<1x2x16xf32, #tpu.memory_space<vmem>>, vector<1x1x16xf32>,
    return
  }
  func.func @transform_0(%arg0: i32) -> (i32, i32, i32, i32) {
    %c0_i32 = arith.constant 0 : i32
    %c0_i32_0 = arith.constant 0 : i32
    %c0_i32_1 = arith.constant 0 : i32
    %c0_i32_2 = arith.constant 0 : i32
    return %arg0, %c0_i32, %c0_i32_0, %c0_i32_1 : i32, i32, i32, i32
  }
  func.func @transform_1(%arg0: i32) -> (i32, i32) {
    %c0_i32 = arith.constant 0 : i32
    %c0_i32_0 = arith.constant 0 : i32
    %c0_i32_1 = arith.constant 0 : i32
    return %c0_i32, %c0_i32_0 : i32, i32
  }
  func.func @transform_2(%arg0: i32) -> (i32, i32) {
    %c0_i32 = arith.constant 0 : i32
    %c0_i32_0 = arith.constant 0 : i32
    %c0_i32_1 = arith.constant 0 : i32
    return %c0_i32, %c0_i32_0 : i32, i32
  }
  func.func @transform_3(%arg0: i32) -> (i32, i32, i32) {
    %c0_i32 = arith.constant 0 : i32
    %c0_i32_0 = arith.constant 0 : i32
    %c0_i32_1 = arith.constant 0 : i32
    return %arg0, %c0_i32, %c0_i32_0 : i32, i32, i32
  }
  func.func @transform_4(%arg0: i32) -> (i32, i32, i32) {
    %c0_i32 = arith.constant 0 : i32
    %c0_i32_0 = arith.constant 0 : i32
    %c0_i32_1 = arith.constant 0 : i32
    return %arg0, %c0_i32, %c0_i32_0 : i32, i32, i32
  }
}

module attributes {stable_mosaic.version = 11 : i64} {
  func.func @_bn_concat_kernel(%arg0: i32, %arg1: memref<1x4x256xf32, #tpu.memory_space<vmem>>, %arg2: memref<1x4x256xf32, #tpu.memory_space<vmem>>, %arg3: memref<1x4x1xf32, #tpu.memory_space<vmem>>, %arg4: memref<1x4x1xf32, #tpu.memory_space<vmem>>, %arg5: memref<1x8x256xf32, #tpu.memory_space<vmem>>) attributes {dimension_semantics = [#tpu.dimension_semantics<parallel>], iteration_bounds = array<i64: 2>, scalar_prefetch = 0 : i64, scratch_operands = 0 : i64, tpu.core_type = #tpu.core_type<tc>, window_params = [{transform_indices = @transform_0, window_bounds = array<i64: 1, 4, 256>}, {transform_indices = @transform_1, window_bounds = array<i64: 1, 4, 256>}, {pipeline_mode = #tpu.pipeline_mode<synchronous>, transform_indices = @transform_2, window_bounds = array<i64: 1, 4, 1>}, {pipeline_mode = #tpu.pipeline_mode<synchronous>, transform_indices = @transform_3, window_bounds = array<i64: 1, 4, 1>}, {transform_indices = @transform_4, window_bounds = array<i64: 1, 8, 256>}]} {
    %c0 = arith.constant 0 : index
    %c0_0 = arith.constant 0 : index
    %c0_1 = arith.constant 0 : index
    %0 = vector.load %arg1[%c0, %c0_0, %c0_1] : memref<1x4x256xf32, #tpu.memory_space<vmem>>, vector<1x4x256xf32>
    %1 = vector.shape_cast %0 : vector<1x4x256xf32> to vector<4x256xf32>
    %c0_2 = arith.constant 0 : index
    %c0_3 = arith.constant 0 : index
    %c0_4 = arith.constant 0 : index
    %2 = vector.load %arg5[%c0_2, %c0_3, %c0_4] : memref<1x8x256xf32, #tpu.memory_space<vmem>>, vector<1x4x256xf32>
    %3 = vector.shape_cast %2 : vector<1x4x256xf32> to vector<4x256xf32>
    %4 = vector.shape_cast %1 : vector<4x256xf32> to vector<1x4x256xf32>
    tpu.vector_store %arg5[%c0_2, %c0_3, %c0_4], %4 {strides = array<i32>} : memref<1x8x256xf32, #tpu.memory_space<vmem>>, vector<1x4x256xf32>,
    %c0_5 = arith.constant 0 : index
    %c0_6 = arith.constant 0 : index
    %c0_7 = arith.constant 0 : index
    %5 = vector.load %arg2[%c0_5, %c0_6, %c0_7] : memref<1x4x256xf32, #tpu.memory_space<vmem>>, vector<1x4x256xf32>
    %6 = vector.shape_cast %5 : vector<1x4x256xf32> to vector<4x256xf32>
    %c0_8 = arith.constant 0 : index
    %c0_9 = arith.constant 0 : index
    %c0_10 = arith.constant 0 : index
    %7 = vector.load %arg3[%c0_8, %c0_9, %c0_10] : memref<1x4x1xf32, #tpu.memory_space<vmem>>, vector<1x4x1xf32>
    %8 = vector.shape_cast %7 : vector<1x4x1xf32> to vector<4x1xf32>
    %9 = vector.broadcast %8 : vector<4x1xf32> to vector<4x256xf32>
    %10 = arith.mulf %6, %9 : vector<4x256xf32>
    %c0_11 = arith.constant 0 : index
    %c0_12 = arith.constant 0 : index
    %c0_13 = arith.constant 0 : index
    %11 = vector.load %arg4[%c0_11, %c0_12, %c0_13] : memref<1x4x1xf32, #tpu.memory_space<vmem>>, vector<1x4x1xf32>
    %12 = vector.shape_cast %11 : vector<1x4x1xf32> to vector<4x1xf32>
    %13 = vector.broadcast %12 : vector<4x1xf32> to vector<4x256xf32>
    %14 = arith.addf %10, %13 : vector<4x256xf32>
    %c0_14 = arith.constant 0 : index
    %c4 = arith.constant 4 : index
    %c0_15 = arith.constant 0 : index
    %15 = vector.load %arg5[%c0_14, %c4, %c0_15] : memref<1x8x256xf32, #tpu.memory_space<vmem>>, vector<1x4x256xf32>
    %16 = vector.shape_cast %15 : vector<1x4x256xf32> to vector<4x256xf32>
    %17 = vector.shape_cast %14 : vector<4x256xf32> to vector<1x4x256xf32>
    tpu.vector_store %arg5[%c0_14, %c4, %c0_15], %17 {strides = array<i32>} : memref<1x8x256xf32, #tpu.memory_space<vmem>>, vector<1x4x256xf32>,
    return
  }
  func.func @transform_0(%arg0: i32) -> (i32, i32, i32) {
    %c0_i32 = arith.constant 0 : i32
    %c0_i32_0 = arith.constant 0 : i32
    %c0_i32_1 = arith.constant 0 : i32
    return %arg0, %c0_i32, %c0_i32_0 : i32, i32, i32
  }
  func.func @transform_1(%arg0: i32) -> (i32, i32, i32) {
    %c0_i32 = arith.constant 0 : i32
    %c0_i32_0 = arith.constant 0 : i32
    %c0_i32_1 = arith.constant 0 : i32
    return %arg0, %c0_i32, %c0_i32_0 : i32, i32, i32
  }
  func.func @transform_2(%arg0: i32) -> (i32, i32, i32) {
    %c0_i32 = arith.constant 0 : i32
    %c0_i32_0 = arith.constant 0 : i32
    %c0_i32_1 = arith.constant 0 : i32
    %c0_i32_2 = arith.constant 0 : i32
    return %c0_i32, %c0_i32_0, %c0_i32_1 : i32, i32, i32
  }
  func.func @transform_3(%arg0: i32) -> (i32, i32, i32) {
    %c0_i32 = arith.constant 0 : i32
    %c0_i32_0 = arith.constant 0 : i32
    %c0_i32_1 = arith.constant 0 : i32
    %c0_i32_2 = arith.constant 0 : i32
    return %c0_i32, %c0_i32_0, %c0_i32_1 : i32, i32, i32
  }
  func.func @transform_4(%arg0: i32) -> (i32, i32, i32) {
    %c0_i32 = arith.constant 0 : i32
    %c0_i32_0 = arith.constant 0 : i32
    %c0_i32_1 = arith.constant 0 : i32
    return %arg0, %c0_i32, %c0_i32_0 : i32, i32, i32
  }
}

</mosaic_0001>

<llo_original>
// kernel: unet_innermost_forward.3
$region0: #{unet_innermost_forward.3}
  #allocation0 [shape = 'u32[]', space=smem, size = 0x4, offset = 0x4, fixed_abs, tag = 'smem constant byte address 0x4 - core index']
  #allocation1 [shape = 'u32[144,128]{1,0:T(1,128)}', space=vmem, size = 0x12000, scoped, tag = 'internal scratch']
  %s0 = inlined_call_operand.vmem [shape: f32[2,4,256], index: 0, kind: input, shape index: {}]
  %s1 = inlined_call_operand.vmem [shape: f32[2,4,256], index: 1, kind: input, shape index: {}]
  %s2 = inlined_call_operand.vmem [shape: f32[1,4,1], index: 2, kind: input, shape index: {}]
  %s3 = inlined_call_operand.vmem [shape: f32[1,4,1], index: 3, kind: input, shape index: {}]
  %s4 = inlined_call_operand.vmem [shape: f32[2,8,256], index: 4, kind: output, shape index: {}]
  %s5 = sld [smem:[#allocation0]]
  $region49: #{unet_innermost_forward.3} parent=0
    _
  %s7 = ssub.s32 1, %s5
  %s8 = scalar_select 0, %s7, %s5
  loop: start=0, step=1, limit=4
  $region2: #{unet_innermost_forward.3} parent=0 // loop_pre_header
    _
  $region3: #{unet_innermost_forward.3} parent=0 // loop_header
    %s10 = sphi 0, %s14
    %p11 = scmp.ge.s32.totalorder %s10, 4
    %s20 = sphi 0, %s22
    %s23 = sphi 0, %s20
    %s24 = sphi 0, %s23
    %s40 = sphi 0, %s24
    %s46 = sphi 0, %s48
    %s49 = sphi 0, %s46
    %s50 = sphi 0, %s49
    %s66 = sphi 0, %s50
    %s70 = sphi 0, %s70
    %s72 = sphi 0, %s70
    %s73 = sphi 0, %s72
    %s87 = sphi 0, %s73
    %s91 = sphi 0, %s91
    %s93 = sphi 0, %s91
    %s94 = sphi 0, %s93
    %s108 = sphi 0, %s94
    %s114 = sphi 0, %s116
    %s117 = sphi 0, %s114
    %s118 = sphi 0, %s117
    %s134 = sphi 0, %s118
  $region4: #{unet_innermost_forward.3} parent=0 // loop_header_branch
    %13 = sbr.rel (%p11) target = $region8
  $region5: #{unet_innermost_forward.3} parent=0 // loop_body
    %s15 = ssub.s32 %s10, 1
    %s16 = ssub.s32 %s10, 2
    %s17 = sadd.s32 %s10, 1
    %s18 = ssub.s32 %s10, %s17
    %p19 = scmp.eq.s32.totalorder %s18, 0
    %s21 = sadd.s32 %s20, 1
    %s22 = scalar_select %p19, %s20, %s21
    %p25 = pneg %p19
    %p26 = scmp.eq.s32.totalorder %s10, 1
    %p27 = por %p25, %p26
    %p28 = scmp.ne.s32.totalorder %s20, %s23
    %p29 = scmp.eq.s32.totalorder %s10, 0
    %p30 = por %p28, %p29
    %p31 = scmp.ne.s32.totalorder %s20, %s23
    %p32 = scmp.eq.s32.totalorder %s15, 1
    %p33 = por %p31, %p32
    %p34 = scmp.ne.s32.totalorder %s23, %s24
    %p35 = scmp.eq.s32.totalorder %s15, 0
    %p36 = por %p34, %p35
    %p37 = scmp.ne.s32.totalorder %s23, %s24
    %p38 = scmp.eq.s32.totalorder %s16, 1
    %p39 = por %p37, %p38
    %p41 = scmp.ne.s32.totalorder %s24, %s40
    %p42 = scmp.eq.s32.totalorder %s16, 0
    %p43 = por %p41, %p42
    %s44 = ssub.s32 %s10, %s17
    %p45 = scmp.eq.s32.totalorder %s44, 0
    %s47 = sadd.s32 %s46, 1
    %s48 = scalar_select %p45, %s46, %s47
    %p51 = pneg %p45
    %p52 = scmp.eq.s32.totalorder %s10, 1
    %p53 = por %p51, %p52
    %p54 = scmp.ne.s32.totalorder %s46, %s49
    %p55 = scmp.eq.s32.totalorder %s10, 0
    %p56 = por %p54, %p55
    %p57 = scmp.ne.s32.totalorder %s46, %s49
    %p58 = scmp.eq.s32.totalorder %s15, 1
    %p59 = por %p57, %p58
    %p60 = scmp.ne.s32.totalorder %s49, %s50
    %p61 = scmp.eq.s32.totalorder %s15, 0
    %p62 = por %p60, %p61
    %p63 = scmp.ne.s32.totalorder %s49, %s50
    %p64 = scmp.eq.s32.totalorder %s16, 1
    %p65 = por %p63, %p64
    %p67 = scmp.ne.s32.totalorder %s50, %s66
    %p68 = scmp.eq.s32.totalorder %s16, 0
    %p69 = por %p67, %p68
    %s71 = sadd.s32 %s70, 1
    %p74 = scmp.eq.s32.totalorder %s10, 1
    %p75 = scmp.ne.s32.totalorder %s70, %s72
    %p76 = scmp.eq.s32.totalorder %s10, 0
    %p77 = por %p75, %p76
    %p78 = scmp.ne.s32.totalorder %s70, %s72
    %p79 = scmp.eq.s32.totalorder %s15, 1
    %p80 = por %p78, %p79
    %p81 = scmp.ne.s32.totalorder %s72, %s73
    %p82 = scmp.eq.s32.totalorder %s15, 0
    %p83 = por %p81, %p82
    %p84 = scmp.ne.s32.totalorder %s72, %s73
    %p85 = scmp.eq.s32.totalorder %s16, 1
    %p86 = por %p84, %p85
    %p88 = scmp.ne.s32.totalorder %s73, %s87
    %p89 = scmp.eq.s32.totalorder %s16, 0
    %p90 = por %p88, %p89
    %s92 = sadd.s32 %s91, 1
    %p95 = scmp.eq.s32.totalorder %s10, 1
    %p96 = scmp.ne.s32.totalorder %s91, %s93
    %p97 = scmp.eq.s32.totalorder %s10, 0
    %p98 = por %p96, %p97
    %p99 = scmp.ne.s32.totalorder %s91, %s93
    %p100 = scmp.eq.s32.totalorder %s15, 1
    %p101 = por %p99, %p100
    %p102 = scmp.ne.s32.totalorder %s93, %s94
    %p103 = scmp.eq.s32.totalorder %s15, 0
    %p104 = por %p102, %p103
    %p105 = scmp.ne.s32.totalorder %s93, %s94
    %p106 = scmp.eq.s32.totalorder %s16, 1
    %p107 = por %p105, %p106
    %p109 = scmp.ne.s32.totalorder %s94, %s108
    %p110 = scmp.eq.s32.totalorder %s16, 0
    %p111 = por %p109, %p110
    %s112 = ssub.s32 %s10, %s17
    %p113 = scmp.eq.s32.totalorder %s112, 0
    %s115 = sadd.s32 %s114, 1
    %s116 = scalar_select %p113, %s114, %s115
    %p119 = pneg %p113
    %p120 = scmp.eq.s32.totalorder %s10, 1
    %p121 = por %p119, %p120
    %p122 = scmp.ne.s32.totalorder %s114, %s117
    %p123 = scmp.eq.s32.totalorder %s10, 0
    %p124 = por %p122, %p123
    %p125 = scmp.ne.s32.totalorder %s114, %s117
    %p126 = scmp.eq.s32.totalorder %s15, 1
    %p127 = por %p125, %p126
    %p128 = scmp.ne.s32.totalorder %s117, %s118
    %p129 = scmp.eq.s32.totalorder %s15, 0
    %p130 = por %p128, %p129
    %p131 = scmp.ne.s32.totalorder %s117, %s118
    %p132 = scmp.eq.s32.totalorder %s16, 1
    %p133 = por %p131, %p132
    %p135 = scmp.ne.s32.totalorder %s118, %s134
    %p136 = scmp.eq.s32.totalorder %s16, 0
    %p137 = por %p135, %p136
    %p138 = scmp.le.s32.totalorder 1, %s10
    %p139 = scmp.lt.s32.totalorder %s10, 3
    %p140 = pnand %p138, %p139
    %p141 = pneg %p140
    // Predicated region
    $region9: #{unet_innermost_forward.3} parent=5 // pred_check
      _
    $region10: #{unet_innermost_forward.3} parent=5 // pred_check_branch
      %143 = sbr.rel (%p140) target = $region12
    $region11: #{unet_innermost_forward.3} parent=5 // pred_region
      %s144 = ssub.s32 %s10, 1
      // Predicated region
      $region13: #{unet_innermost_forward.3} parent=11 // pred_check
        %p145 = pneg %p83
      $region14: #{unet_innermost_forward.3} parent=11 // pred_check_branch
        %147 = sbr.rel (%p145) target = $region16
      $region15: #{unet_innermost_forward.3} parent=11 // pred_region
        _
      $region16: #{unet_innermost_forward.3} parent=11 // pred_fallthru
        _
      // Predicated region
      $region17: #{unet_innermost_forward.3} parent=11 // pred_check
        %p148 = pneg %p104
      $region18: #{unet_innermost_forward.3} parent=11 // pred_check_branch
        %150 = sbr.rel (%p148) target = $region20
      $region19: #{unet_innermost_forward.3} parent=11 // pred_region
        _
      $region20: #{unet_innermost_forward.3} parent=11 // pred_fallthru
        _
    $region12: #{unet_innermost_forward.3} parent=5 // pred_fallthru
      _
    %p151 = scmp.lt.s32.totalorder %s10, 2
    // Predicated region
    $region21: #{unet_innermost_forward.3} parent=5 // pred_check
      %p152 = pneg %p151
    $region22: #{unet_innermost_forward.3} parent=5 // pred_check_branch
      %154 = sbr.rel (%p152) target = $region24
    $region23: #{unet_innermost_forward.3} parent=5 // pred_region
      // Predicated region
      $region25: #{unet_innermost_forward.3} parent=23 // pred_check
        %p155 = pneg %p30
      $region26: #{unet_innermost_forward.3} parent=23 // pred_check_branch
        %157 = sbr.rel (%p155) target = $region28
      $region27: #{unet_innermost_forward.3} parent=23 // pred_region
        %p158 = scmp.lt.s32.totalorder %s10, 1
        %s159 = scalar_select %p158, %s10, 1
        %s160 = smul.addr %s159, 2
        %s161 = smul.addr %s160, 4
        %s162 = scalar_lea.vmem %s0, %s161
      $region28: #{unet_innermost_forward.3} parent=23 // pred_fallthru
        _
      // Predicated region
      $region29: #{unet_innermost_forward.3} parent=23 // pred_check
        %p163 = pneg %p56
      $region30: #{unet_innermost_forward.3} parent=23 // pred_check_branch
        %165 = sbr.rel (%p163) target = $region32
      $region31: #{unet_innermost_forward.3} parent=23 // pred_region
        %p166 = scmp.lt.s32.totalorder %s10, 1
        %s167 = scalar_select %p166, %s10, 1
        %s168 = smul.addr %s167, 2
        %s169 = smul.addr %s168, 4
        %s170 = scalar_lea.vmem %s1, %s169
      $region32: #{unet_innermost_forward.3} parent=23 // pred_fallthru
        _
    $region24: #{unet_innermost_forward.3} parent=5 // pred_fallthru
      _
    %p171 = scmp.le.s32.totalorder 1, %s10
    %p172 = scmp.lt.s32.totalorder %s10, 3
    %p173 = pnand %p171, %p172
    %p174 = pneg %p173
    // Predicated region
    $region33: #{unet_innermost_forward.3} parent=5 // pred_check
      _
    $region34: #{unet_innermost_forward.3} parent=5 // pred_check_branch
      %176 = sbr.rel (%p173) target = $region36
    $region35: #{unet_innermost_forward.3} parent=5 // pred_region
      %s177 = ssub.s32 %s10, 1
      %p178 = scmp.lt.s32.totalorder %s15, 1
      %s179 = scalar_select %p178, %s15, 1
      %s180 = smul.addr %s179, 2
      %s181 = smul.addr %s180, 4
      %s182 = scalar_lea.vmem %s0, %s181
      %p183 = pneg %p36
      %p184 = pneg %p33
      %p185 = scmp.lt.s32.totalorder %s15, 1
      %s186 = scalar_select %p185, %s15, 1
      %s187 = smul.addr %s186, 2
      %s188 = smul.addr %s187, 4
      %s189 = scalar_lea.vmem %s1, %s188
      %p190 = pneg %p62
      %p191 = pneg %p59
      %p192 = pneg %p83
      %p193 = pneg %p80
      %p194 = pneg %p104
      %p195 = pneg %p101
      %p196 = pneg %p130
      %p197 = pneg %p127
      %p198 = scmp.lt.s32.totalorder %s15, 1
      %s199 = scalar_select %p198, %s15, 1
      %s200 = smul.addr %s199, 2
      %s201 = smul.addr %s200, 8
      %s202 = scalar_lea.vmem %s4, %s201
      %p203 = scmp.lt.s32.totalorder %s15, 1
      %s204 = scalar_select %p203, %s15, 1
      %s205 = smul.addr %s204, 2
      %s206 = smul.addr %s205, 4
      %s207 = scalar_lea.vmem %s0, %s206
      %p208 = scmp.lt.s32.totalorder %s15, 1
      %s209 = scalar_select %p208, %s15, 1
      %s210 = smul.addr %s209, 2
      %s211 = smul.addr %s210, 4
      %s212 = scalar_lea.vmem %s1, %s211
      %p213 = scmp.lt.s32.totalorder %s15, 1
      %s214 = scalar_select %p213, %s15, 1
      %s215 = smul.addr %s214, 2
      %s216 = smul.addr %s215, 8
      %s217 = scalar_lea.vmem %s4, %s216
      %v218 = vld [vmem:[%s207] sm:$0xff]
      %v220 = vcombine.high %v218, %v218
      %222 = vst [vmem:[%s217] sm:$0xf] %v218
      %223 = vst [vmem:[%s217 + $0x8] sm:$0xf] %v220
      %v224 = vld [vmem:[%s212] sm:$0xff]
      %v225 = vld [vmem:[%s2] sm:$0xf]
      %227 = vset.pattern.permute.xlu0 0
      %228 = vperm.xlu0 %227, %v225
      %v229 = vpop.permute.xlu0 %228
      %v231 = vunpack.c.l.s4 839922192
      %v232 = vunpack.c.0.s8 %v231
      %v233 = vlaneseq
      %v234 = vshrl.u32 %v233, 7
      %v235 = vsub.s32 %v232, %v234
      %v236 = vrot.slane %v229, %v235
      %v238 = vmul.f32 %v224, %v236
      %v239 = vld [vmem:[%s3] sm:$0xf]
      %241 = vset.pattern.permute.xlu0 0
      %242 = vperm.xlu0 %241, %v239
      %v243 = vpop.permute.xlu0 %242
      %v245 = vunpack.c.l.s4 839922192
      %v246 = vunpack.c.0.s8 %v245
      %v247 = vlaneseq
      %v248 = vshrl.u32 %v247, 7
      %v249 = vsub.s32 %v246, %v248
      %v250 = vrot.slane %v243, %v249
      %v252 = vadd.f32 %v238, %v250
      %v254 = vcombine.low %v252, %v252
      %256 = vst [vmem:[%s217] sm:$0xf0] %v254
      %257 = vst [vmem:[%s217 + $0x8] sm:$0xf0] %v252
      %p258 = scmp.lt.s32.totalorder %s15, 1
      %s259 = scalar_select %p258, %s15, 1
      %s260 = smul.addr %s259, 2
      %s261 = smul.addr %s260, 8
      %s262 = scalar_lea.vmem %s4, %s261
      // Predicated region
      $region37: #{unet_innermost_forward.3} parent=35 // pred_check
        %p263 = pneg %p127
      $region38: #{unet_innermost_forward.3} parent=35 // pred_check_branch
        %265 = sbr.rel (%p263) target = $region40
      $region39: #{unet_innermost_forward.3} parent=35 // pred_region
        _
      $region40: #{unet_innermost_forward.3} parent=35 // pred_fallthru
        _
    $region36: #{unet_innermost_forward.3} parent=5 // pred_fallthru
      _
    %p266 = scmp.le.s32.totalorder 2, %s10
    // Predicated region
    $region41: #{unet_innermost_forward.3} parent=5 // pred_check
      %p267 = pneg %p266
    $region42: #{unet_innermost_forward.3} parent=5 // pred_check_branch
      %269 = sbr.rel (%p267) target = $region44
    $region43: #{unet_innermost_forward.3} parent=5 // pred_region
      %s270 = ssub.s32 %s10, 2
      // Predicated region
      $region45: #{unet_innermost_forward.3} parent=43 // pred_check
        %p271 = pneg %p133
      $region46: #{unet_innermost_forward.3} parent=43 // pred_check_branch
        %273 = sbr.rel (%p271) target = $region48
      $region47: #{unet_innermost_forward.3} parent=43 // pred_region
        %p274 = scmp.lt.s32.totalorder %s16, 1
        %s275 = scalar_select %p274, %s16, 1
        %s276 = smul.addr %s275, 2
        %s277 = smul.addr %s276, 8
        %s278 = scalar_lea.vmem %s4, %s277
      $region48: #{unet_innermost_forward.3} parent=43 // pred_fallthru
        _
    $region44: #{unet_innermost_forward.3} parent=5 // pred_fallthru
      _
  $region6: #{unet_innermost_forward.3} parent=0 // loop_footer
    %s14 = sadd.s32 1, %s10
  $region7: #{unet_innermost_forward.3} parent=0 // loop_footer_branch
    %9 = sbr.rel target = $region3
  $region8: #{unet_innermost_forward.3} parent=0 // loop_exit
    _

// kernel: unet_innermost_forward.2
$region0: #{unet_innermost_forward.2}
  #allocation0 [shape = 'u32[]', space=smem, size = 0x4, offset = 0x4, fixed_abs, tag = 'smem constant byte address 0x4 - core index']
  #allocation1 [shape = 'u32[144,128]{1,0:T(1,128)}', space=vmem, size = 0x12000, scoped, tag = 'internal scratch']
  #allocation2 [shape = 'f32[8,8,64]{2,1,0:T(8,128)}', space=vmem, size = 0x8000, scoped, tag = 'scratch operand']
  #allocation3 [shape = 'f32[10,10,8]{2,1,0:T(8,128)}', space=vmem, size = 0x14000, scoped, tag = 'scratch operand']
  #allocation4 [shape = 'f32[8,8,72]{2,1,0:T(8,128)}', space=vmem, size = 0x8000, scoped, tag = 'scratch operand']
  %s0 = inlined_call_operand.vmem [shape: f32[8,9,9,4], index: 0, kind: input, shape index: {}]
  %s1 = inlined_call_operand.vmem [shape: bf16[64,8], index: 1, kind: input, shape index: {}]
  %s2 = inlined_call_operand.vmem [shape: bf16[72,16], index: 2, kind: input, shape index: {}]
  %s3 = inlined_call_operand.vmem [shape: f32[2,64,16], index: 3, kind: output, shape index: {0}]
  %s4 = inlined_call_operand.vmem [shape: f32[2,2,16], index: 4, kind: output, shape index: {1}]
  %5 = xla_tuple %s3, %s4
  %s6 = sld [smem:[#allocation0]]
  $region53: #{unet_innermost_forward.2} parent=0
    _
  %s8 = ssub.s32 1, %s6
  %s9 = scalar_select 0, %s8, %s6
  loop: start=0, step=1, limit=4
  $region2: #{unet_innermost_forward.2} parent=0 // loop_pre_header
    _
  $region3: #{unet_innermost_forward.2} parent=0 // loop_header
    %s11 = sphi 0, %s15
    %p12 = scmp.ge.s32.totalorder %s11, 4
    %s21 = sphi 0, %s23
    %s24 = sphi 0, %s21
    %s25 = sphi 0, %s24
    %s41 = sphi 0, %s25
    %s45 = sphi 0, %s45
    %s47 = sphi 0, %s45
    %s48 = sphi 0, %s47
    %s62 = sphi 0, %s48
    %s66 = sphi 0, %s66
    %s68 = sphi 0, %s66
    %s69 = sphi 0, %s68
    %s83 = sphi 0, %s69
    %s89 = sphi 0, %s91
    %s92 = sphi 0, %s89
    %s93 = sphi 0, %s92
    %s109 = sphi 0, %s93
    %s115 = sphi 0, %s117
    %s118 = sphi 0, %s115
    %s119 = sphi 0, %s118
    %s135 = sphi 0, %s119
  $region4: #{unet_innermost_forward.2} parent=0 // loop_header_branch
    %14 = sbr.rel (%p12) target = $region8
  $region5: #{unet_innermost_forward.2} parent=0 // loop_body
    %s16 = ssub.s32 %s11, 1
    %s17 = ssub.s32 %s11, 2
    %s18 = sadd.s32 %s11, 1
    %s19 = ssub.s32 %s11, %s18
    %p20 = scmp.eq.s32.totalorder %s19, 0
    %s22 = sadd.s32 %s21, 1
    %s23 = scalar_select %p20, %s21, %s22
    %p26 = pneg %p20
    %p27 = scmp.eq.s32.totalorder %s11, 1
    %p28 = por %p26, %p27
    %p29 = scmp.ne.s32.totalorder %s21, %s24
    %p30 = scmp.eq.s32.totalorder %s11, 0
    %p31 = por %p29, %p30
    %p32 = scmp.ne.s32.totalorder %s21, %s24
    %p33 = scmp.eq.s32.totalorder %s16, 1
    %p34 = por %p32, %p33
    %p35 = scmp.ne.s32.totalorder %s24, %s25
    %p36 = scmp.eq.s32.totalorder %s16, 0
    %p37 = por %p35, %p36
    %p38 = scmp.ne.s32.totalorder %s24, %s25
    %p39 = scmp.eq.s32.totalorder %s17, 1
    %p40 = por %p38, %p39
    %p42 = scmp.ne.s32.totalorder %s25, %s41
    %p43 = scmp.eq.s32.totalorder %s17, 0
    %p44 = por %p42, %p43
    %s46 = sadd.s32 %s45, 1
    %p49 = scmp.eq.s32.totalorder %s11, 1
    %p50 = scmp.ne.s32.totalorder %s45, %s47
    %p51 = scmp.eq.s32.totalorder %s11, 0
    %p52 = por %p50, %p51
    %p53 = scmp.ne.s32.totalorder %s45, %s47
    %p54 = scmp.eq.s32.totalorder %s16, 1
    %p55 = por %p53, %p54
    %p56 = scmp.ne.s32.totalorder %s47, %s48
    %p57 = scmp.eq.s32.totalorder %s16, 0
    %p58 = por %p56, %p57
    %p59 = scmp.ne.s32.totalorder %s47, %s48
    %p60 = scmp.eq.s32.totalorder %s17, 1
    %p61 = por %p59, %p60
    %p63 = scmp.ne.s32.totalorder %s48, %s62
    %p64 = scmp.eq.s32.totalorder %s17, 0
    %p65 = por %p63, %p64
    %s67 = sadd.s32 %s66, 1
    %p70 = scmp.eq.s32.totalorder %s11, 1
    %p71 = scmp.ne.s32.totalorder %s66, %s68
    %p72 = scmp.eq.s32.totalorder %s11, 0
    %p73 = por %p71, %p72
    %p74 = scmp.ne.s32.totalorder %s66, %s68
    %p75 = scmp.eq.s32.totalorder %s16, 1
    %p76 = por %p74, %p75
    %p77 = scmp.ne.s32.totalorder %s68, %s69
    %p78 = scmp.eq.s32.totalorder %s16, 0
    %p79 = por %p77, %p78
    %p80 = scmp.ne.s32.totalorder %s68, %s69
    %p81 = scmp.eq.s32.totalorder %s17, 1
    %p82 = por %p80, %p81
    %p84 = scmp.ne.s32.totalorder %s69, %s83
    %p85 = scmp.eq.s32.totalorder %s17, 0
    %p86 = por %p84, %p85
    %s87 = ssub.s32 %s11, %s18
    %p88 = scmp.eq.s32.totalorder %s87, 0
    %s90 = sadd.s32 %s89, 1
    %s91 = scalar_select %p88, %s89, %s90
    %p94 = pneg %p88
    %p95 = scmp.eq.s32.totalorder %s11, 1
    %p96 = por %p94, %p95
    %p97 = scmp.ne.s32.totalorder %s89, %s92
    %p98 = scmp.eq.s32.totalorder %s11, 0
    %p99 = por %p97, %p98
    %p100 = scmp.ne.s32.totalorder %s89, %s92
    %p101 = scmp.eq.s32.totalorder %s16, 1
    %p102 = por %p100, %p101
    %p103 = scmp.ne.s32.totalorder %s92, %s93
    %p104 = scmp.eq.s32.totalorder %s16, 0
    %p105 = por %p103, %p104
    %p106 = scmp.ne.s32.totalorder %s92, %s93
    %p107 = scmp.eq.s32.totalorder %s17, 1
    %p108 = por %p106, %p107
    %p110 = scmp.ne.s32.totalorder %s93, %s109
    %p111 = scmp.eq.s32.totalorder %s17, 0
    %p112 = por %p110, %p111
    %s113 = ssub.s32 %s11, %s18
    %p114 = scmp.eq.s32.totalorder %s113, 0
    %s116 = sadd.s32 %s115, 1
    %s117 = scalar_select %p114, %s115, %s116
    %p120 = pneg %p114
    %p121 = scmp.eq.s32.totalorder %s11, 1
    %p122 = por %p120, %p121
    %p123 = scmp.ne.s32.totalorder %s115, %s118
    %p124 = scmp.eq.s32.totalorder %s11, 0
    %p125 = por %p123, %p124
    %p126 = scmp.ne.s32.totalorder %s115, %s118
    %p127 = scmp.eq.s32.totalorder %s16, 1
    %p128 = por %p126, %p127
    %p129 = scmp.ne.s32.totalorder %s118, %s119
    %p130 = scmp.eq.s32.totalorder %s16, 0
    %p131 = por %p129, %p130
    %p132 = scmp.ne.s32.totalorder %s118, %s119
    %p133 = scmp.eq.s32.totalorder %s17, 1
    %p134 = por %p132, %p133
    %p136 = scmp.ne.s32.totalorder %s119, %s135
    %p137 = scmp.eq.s32.totalorder %s17, 0
    %p138 = por %p136, %p137
    %p139 = scmp.le.s32.totalorder 1, %s11
    %p140 = scmp.lt.s32.totalorder %s11, 3
    %p141 = pnand %p139, %p140
    %p142 = pneg %p141
    // Predicated region
    $region9: #{unet_innermost_forward.2} parent=5 // pred_check
      _
    $region10: #{unet_innermost_forward.2} parent=5 // pred_check_branch
      %144 = sbr.rel (%p141) target = $region12
    $region11: #{unet_innermost_forward.2} parent=5 // pred_region
      %s145 = ssub.s32 %s11, 1
      // Predicated region
      $region13: #{unet_innermost_forward.2} parent=11 // pred_check
        %p146 = pneg %p58
      $region14: #{unet_innermost_forward.2} parent=11 // pred_check_branch
        %148 = sbr.rel (%p146) target = $region16
      $region15: #{unet_innermost_forward.2} parent=11 // pred_region
        _
      $region16: #{unet_innermost_forward.2} parent=11 // pred_fallthru
        _
      // Predicated region
      $region17: #{unet_innermost_forward.2} parent=11 // pred_check
        %p149 = pneg %p79
      $region18: #{unet_innermost_forward.2} parent=11 // pred_check_branch
        %151 = sbr.rel (%p149) target = $region20
      $region19: #{unet_innermost_forward.2} parent=11 // pred_region
        _
      $region20: #{unet_innermost_forward.2} parent=11 // pred_fallthru
        _
    $region12: #{unet_innermost_forward.2} parent=5 // pred_fallthru
      _
    %p152 = scmp.lt.s32.totalorder %s11, 2
    // Predicated region
    $region21: #{unet_innermost_forward.2} parent=5 // pred_check
      %p153 = pneg %p152
    $region22: #{unet_innermost_forward.2} parent=5 // pred_check_branch
      %155 = sbr.rel (%p153) target = $region24
    $region23: #{unet_innermost_forward.2} parent=5 // pred_region
      // Predicated region
      $region25: #{unet_innermost_forward.2} parent=23 // pred_check
        %p156 = pneg %p31
      $region26: #{unet_innermost_forward.2} parent=23 // pred_check_branch
        %158 = sbr.rel (%p156) target = $region28
      $region27: #{unet_innermost_forward.2} parent=23 // pred_region
        %s159 = smul.u32 4, %s11
        %p160 = scmp.lt.s32.totalorder %s159, 7
        %s161 = scalar_select %p160, %s159, 7
        %s162 = smul.addr %s161, 18
        %s163 = smul.addr %s162, 8
        %s164 = scalar_lea.vmem %s0, %s163
        %s165 = smul.u32 4, %s11
      $region28: #{unet_innermost_forward.2} parent=23 // pred_fallthru
        _
    $region24: #{unet_innermost_forward.2} parent=5 // pred_fallthru
      _
    %p166 = scmp.le.s32.totalorder 1, %s11
    %p167 = scmp.lt.s32.totalorder %s11, 3
    %p168 = pnand %p166, %p167
    %p169 = pneg %p168
    // Predicated region
    $region29: #{unet_innermost_forward.2} parent=5 // pred_check
      _
    $region30: #{unet_innermost_forward.2} parent=5 // pred_check_branch
      %171 = sbr.rel (%p168) target = $region32
    $region31: #{unet_innermost_forward.2} parent=5 // pred_region
      %s172 = ssub.s32 %s11, 1
      %s173 = smul.u32 4, %s16
      %p174 = scmp.lt.s32.totalorder %s173, 7
      %s175 = scalar_select %p174, %s173, 7
      %s176 = smul.addr %s175, 18
      %s177 = smul.addr %s176, 8
      %s178 = scalar_lea.vmem %s0, %s177
      %p179 = pneg %p37
      %p180 = pneg %p34
      %p181 = pneg %p58
      %p182 = pneg %p55
      %p183 = pneg %p79
      %p184 = pneg %p76
      %p185 = pneg %p105
      %p186 = pneg %p102
      %p187 = scmp.lt.s32.totalorder %s16, 1
      %s188 = scalar_select %p187, %s16, 1
      %s189 = smul.addr %s188, 8
      %s190 = smul.addr %s189, 8
      %s191 = scalar_lea.vmem %s3, %s190
      %p192 = pneg %p131
      %p193 = pneg %p128
      %p194 = scmp.lt.s32.totalorder %s16, 1
      %s195 = scalar_select %p194, %s16, 1
      %s196 = smul.addr %s195, 2
      %s197 = scalar_lea.vmem %s4, %s196
      %s198 = smul.u32 4, %s16
      %p199 = scmp.lt.s32.totalorder %s198, 7
      %s200 = scalar_select %p199, %s198, 7
      %s201 = smul.addr %s200, 18
      %s202 = smul.addr %s201, 8
      %s203 = scalar_lea.vmem %s0, %s202
      %s204 = smul.u32 4, %s16
      %p205 = scmp.lt.s32.totalorder %s16, 1
      %s206 = scalar_select %p205, %s16, 1
      %s207 = smul.addr %s206, 8
      %s208 = smul.addr %s207, 8
      %s209 = scalar_lea.vmem %s3, %s208
      %p210 = scmp.lt.s32.totalorder %s16, 1
      %s211 = scalar_select %p210, %s16, 1
      %s212 = smul.addr %s211, 2
      %s213 = scalar_lea.vmem %s4, %s212
      %v215 = vld [vmem:[%s203] sm:$0xff]
      %v216 = vld [vmem:[%s203 + $0x8] sm:$0x1]
      %v217 = vld [vmem:[%s203 + $0x10] sm:$0xff]
      %v218 = vld [vmem:[%s203 + $0x18] sm:$0x1]
      %v219 = vld [vmem:[%s203 + $0x20] sm:$0xff]
      %v220 = vld [vmem:[%s203 + $0x28] sm:$0x1]
      %v221 = vld [vmem:[%s203 + $0x30] sm:$0xff]
      %v222 = vld [vmem:[%s203 + $0x38] sm:$0x1]
      %v223 = vld [vmem:[%s203 + $0x40] sm:$0xff]
      %v224 = vld [vmem:[%s203 + $0x48] sm:$0x1]
      %v225 = vld [vmem:[%s203 + $0x50] sm:$0xff]
      %v226 = vld [vmem:[%s203 + $0x58] sm:$0x1]
      %v227 = vld [vmem:[%s203 + $0x60] sm:$0xff]
      %v228 = vld [vmem:[%s203 + $0x68] sm:$0x1]
      %v229 = vld [vmem:[%s203 + $0x70] sm:$0xff]
      %v230 = vld [vmem:[%s203 + $0x78] sm:$0x1]
      %v231 = vld [vmem:[%s203 + $0x80] sm:$0xff]
      %v232 = vld [vmem:[%s203 + $0x88] sm:$0x1]
      %vm233 = vcmp.gt.f32.partialorder %v215, 0.0
      %vm234 = vcmp.gt.f32.partialorder %v216, 0.0
      %vm235 = vcmp.gt.f32.partialorder %v217, 0.0
      %vm236 = vcmp.gt.f32.partialorder %v218, 0.0
      %vm237 = vcmp.gt.f32.partialorder %v219, 0.0
      %vm238 = vcmp.gt.f32.partialorder %v220, 0.0
      %vm239 = vcmp.gt.f32.partialorder %v221, 0.0
      %vm240 = vcmp.gt.f32.partialorder %v222, 0.0
      %vm241 = vcmp.gt.f32.partialorder %v223, 0.0
      %vm242 = vcmp.gt.f32.partialorder %v224, 0.0
      %vm243 = vcmp.gt.f32.partialorder %v225, 0.0
      %vm244 = vcmp.gt.f32.partialorder %v226, 0.0
      %vm245 = vcmp.gt.f32.partialorder %v227, 0.0
      %vm246 = vcmp.gt.f32.partialorder %v228, 0.0
      %vm247 = vcmp.gt.f32.partialorder %v229, 0.0
      %vm248 = vcmp.gt.f32.partialorder %v230, 0.0
      %vm249 = vcmp.gt.f32.partialorder %v231, 0.0
      %vm250 = vcmp.gt.f32.partialorder %v232, 0.0
      %v251 = vmul.f32 %v215, 0.2
      %v252 = vmul.f32 %v216, 0.2
      %v253 = vmul.f32 %v217, 0.2
      %v254 = vmul.f32 %v218, 0.2
      %v255 = vmul.f32 %v219, 0.2
      %v256 = vmul.f32 %v220, 0.2
      %v257 = vmul.f32 %v221, 0.2
      %v258 = vmul.f32 %v222, 0.2
      %v259 = vmul.f32 %v223, 0.2
      %v260 = vmul.f32 %v224, 0.2
      %v261 = vmul.f32 %v225, 0.2
      %v262 = vmul.f32 %v226, 0.2
      %v263 = vmul.f32 %v227, 0.2
      %v264 = vmul.f32 %v228, 0.2
      %v265 = vmul.f32 %v229, 0.2
      %v266 = vmul.f32 %v230, 0.2
      %v267 = vmul.f32 %v231, 0.2
      %v268 = vmul.f32 %v232, 0.2
      %v269 = vsel %vm233, %v215, %v251
      %v270 = vsel %vm234, %v216, %v252
      %v271 = vsel %vm235, %v217, %v253
      %v272 = vsel %vm236, %v218, %v254
      %v273 = vsel %vm237, %v219, %v255
      %v274 = vsel %vm238, %v220, %v256
      %v275 = vsel %vm239, %v221, %v257
      %v276 = vsel %vm240, %v222, %v258
      %v277 = vsel %vm241, %v223, %v259
      %v278 = vsel %vm242, %v224, %v260
      %v279 = vsel %vm243, %v225, %v261
      %v280 = vsel %vm244, %v226, %v262
      %v281 = vsel %vm245, %v227, %v263
      %v282 = vsel %vm246, %v228, %v264
      %v283 = vsel %vm247, %v229, %v265
      %v284 = vsel %vm248, %v230, %v266
      %v285 = vsel %vm249, %v231, %v267
      %v286 = vsel %vm250, %v232, %v268
      %vm287 = vcmask 31744
      %288 = vst.msk [vmem:[#allocation2] sm:$0xff] %vm287, %v269
      %289 = vst.msk [vmem:[#allocation2 + $0x8] sm:$0xff] %vm287, %v271
      %290 = vst.msk [vmem:[#allocation2 + $0x10] sm:$0xff] %vm287, %v273
      %291 = vst.msk [vmem:[#allocation2 + $0x18] sm:$0xff] %vm287, %v275
      %292 = vst.msk [vmem:[#allocation2 + $0x20] sm:$0xff] %vm287, %v277
      %293 = vst.msk [vmem:[#allocation2 + $0x28] sm:$0xff] %vm287, %v279
      %294 = vst.msk [vmem:[#allocation2 + $0x30] sm:$0xff] %vm287, %v281
      %295 = vst.msk [vmem:[#allocation2 + $0x38] sm:$0xff] %vm287, %v283
      %312 = vrot.lane.b32.xlu0 %v269, 8
      %v313 = vpop.permute.xlu0 %312
      %314 = vrot.lane.b32.xlu0 %v270, 8
      %v315 = vpop.permute.xlu0 %314
      %316 = vrot.lane.b32.xlu0 %v271, 8
      %v317 = vpop.permute.xlu0 %316
      %318 = vrot.lane.b32.xlu0 %v272, 8
      %v319 = vpop.permute.xlu0 %318
      %320 = vrot.lane.b32.xlu0 %v273, 8
      %v321 = vpop.permute.xlu0 %320
      %322 = vrot.lane.b32.xlu0 %v274, 8
      %v323 = vpop.permute.xlu0 %322
      %324 = vrot.lane.b32.xlu0 %v275, 8
      %v325 = vpop.permute.xlu0 %324
      %326 = vrot.lane.b32.xlu0 %v276, 8
      %v327 = vpop.permute.xlu0 %326
      %328 = vrot.lane.b32.xlu0 %v277, 8
      %v329 = vpop.permute.xlu0 %328
      %330 = vrot.lane.b32.xlu0 %v278, 8
      %v331 = vpop.permute.xlu0 %330
      %332 = vrot.lane.b32.xlu0 %v279, 8
      %v333 = vpop.permute.xlu0 %332
      %334 = vrot.lane.b32.xlu0 %v280, 8
      %v335 = vpop.permute.xlu0 %334
      %336 = vrot.lane.b32.xlu0 %v281, 8
      %v337 = vpop.permute.xlu0 %336
      %338 = vrot.lane.b32.xlu0 %v282, 8
      %v339 = vpop.permute.xlu0 %338
      %340 = vrot.lane.b32.xlu0 %v283, 8
      %v341 = vpop.permute.xlu0 %340
      %342 = vrot.lane.b32.xlu0 %v284, 8
      %v343 = vpop.permute.xlu0 %342
      %vm360 = vcmask 97345
      %361 = vst.msk [vmem:[#allocation2 - $0x1] sm:$0xfe] %vm360, %v313
      %vm362 = vcmask 90176
      %363 = vst.msk [vmem:[#allocation2 + $0x7] sm:$0x1] %vm362, %v315
      %364 = vst.msk [vmem:[#allocation2 + $0x7] sm:$0xfe] %vm360, %v317
      %365 = vst.msk [vmem:[#allocation2 + $0xf] sm:$0x1] %vm362, %v319
      %366 = vst.msk [vmem:[#allocation2 + $0xf] sm:$0xfe] %vm360, %v321
      %367 = vst.msk [vmem:[#allocation2 + $0x17] sm:$0x1] %vm362, %v323
      %368 = vst.msk [vmem:[#allocation2 + $0x17] sm:$0xfe] %vm360, %v325
      %369 = vst.msk [vmem:[#allocation2 + $0x1f] sm:$0x1] %vm362, %v327
      %370 = vst.msk [vmem:[#allocation2 + $0x1f] sm:$0xfe] %vm360, %v329
      %371 = vst.msk [vmem:[#allocation2 + $0x27] sm:$0x1] %vm362, %v331
      %372 = vst.msk [vmem:[#allocation2 + $0x27] sm:$0xfe] %vm360, %v333
      %373 = vst.msk [vmem:[#allocation2 + $0x2f] sm:$0x1] %vm362, %v335
      %374 = vst.msk [vmem:[#allocation2 + $0x2f] sm:$0xfe] %vm360, %v337
      %375 = vst.msk [vmem:[#allocation2 + $0x37] sm:$0x1] %vm362, %v339
      %376 = vst.msk [vmem:[#allocation2 + $0x37] sm:$0xfe] %vm360, %v341
      %377 = vst.msk [vmem:[#allocation2 + $0x3f] sm:$0x1] %vm362, %v343
      %379 = vrot.lane.b32.xlu0 %v271, 32
      %v380 = vpop.permute.xlu0 %379
      %381 = vrot.lane.b32.xlu0 %v273, 32
      %v382 = vpop.permute.xlu0 %381
      %383 = vrot.lane.b32.xlu0 %v275, 32
      %v384 = vpop.permute.xlu0 %383
      %385 = vrot.lane.b32.xlu0 %v277, 32
      %v386 = vpop.permute.xlu0 %385
      %387 = vrot.lane.b32.xlu0 %v279, 32
      %v388 = vpop.permute.xlu0 %387
      %389 = vrot.lane.b32.xlu0 %v281, 32
      %v390 = vpop.permute.xlu0 %389
      %391 = vrot.lane.b32.xlu0 %v283, 32
      %v392 = vpop.permute.xlu0 %391
      %393 = vrot.lane.b32.xlu0 %v285, 32
      %v394 = vpop.permute.xlu0 %393
      %vm403 = vcmask 294144
      %404 = vst.msk [vmem:[#allocation2] sm:$0xff] %vm403, %v380
      %405 = vst.msk [vmem:[#allocation2 + $0x8] sm:$0xff] %vm403, %v382
      %406 = vst.msk [vmem:[#allocation2 + $0x10] sm:$0xff] %vm403, %v384
      %407 = vst.msk [vmem:[#allocation2 + $0x18] sm:$0xff] %vm403, %v386
      %408 = vst.msk [vmem:[#allocation2 + $0x20] sm:$0xff] %vm403, %v388
      %409 = vst.msk [vmem:[#allocation2 + $0x28] sm:$0xff] %vm403, %v390
      %410 = vst.msk [vmem:[#allocation2 + $0x30] sm:$0xff] %vm403, %v392
      %411 = vst.msk [vmem:[#allocation2 + $0x38] sm:$0xff] %vm403, %v394
      %413 = vrot.lane.b32.xlu0 %v271, 40
      %v414 = vpop.permute.xlu0 %413
      %415 = vrot.lane.b32.xlu0 %v272, 40
      %v416 = vpop.permute.xlu0 %415
      %417 = vrot.lane.b32.xlu0 %v273, 40
      %v418 = vpop.permute.xlu0 %417
      %419 = vrot.lane.b32.xlu0 %v274, 40
      %v420 = vpop.permute.xlu0 %419
      %421 = vrot.lane.b32.xlu0 %v275, 40
      %v422 = vpop.permute.xlu0 %421
      %423 = vrot.lane.b32.xlu0 %v276, 40
      %v424 = vpop.permute.xlu0 %423
      %425 = vrot.lane.b32.xlu0 %v277, 40
      %v426 = vpop.permute.xlu0 %425
      %427 = vrot.lane.b32.xlu0 %v278, 40
      %v428 = vpop.permute.xlu0 %427
      %429 = vrot.lane.b32.xlu0 %v279, 40
      %v430 = vpop.permute.xlu0 %429
      %431 = vrot.lane.b32.xlu0 %v280, 40
      %v432 = vpop.permute.xlu0 %431
      %433 = vrot.lane.b32.xlu0 %v281, 40
      %v434 = vpop.permute.xlu0 %433
      %435 = vrot.lane.b32.xlu0 %v282, 40
      %v436 = vpop.permute.xlu0 %435
      %437 = vrot.lane.b32.xlu0 %v283, 40
      %v438 = vpop.permute.xlu0 %437
      %439 = vrot.lane.b32.xlu0 %v284, 40
      %v440 = vpop.permute.xlu0 %439
      %441 = vrot.lane.b32.xlu0 %v285, 40
      %v442 = vpop.permute.xlu0 %441
      %443 = vrot.lane.b32.xlu0 %v286, 40
      %v444 = vpop.permute.xlu0 %443
      %vm461 = vcmask 359745
      %462 = vst.msk [vmem:[#allocation2 - $0x1] sm:$0xfe] %vm461, %v414
      %vm463 = vcmask 352576
      %464 = vst.msk [vmem:[#allocation2 + $0x7] sm:$0x1] %vm463, %v416
      %465 = vst.msk [vmem:[#allocation2 + $0x7] sm:$0xfe] %vm461, %v418
      %466 = vst.msk [vmem:[#allocation2 + $0xf] sm:$0x1] %vm463, %v420
      %467 = vst.msk [vmem:[#allocation2 + $0xf] sm:$0xfe] %vm461, %v422
      %468 = vst.msk [vmem:[#allocation2 + $0x17] sm:$0x1] %vm463, %v424
      %469 = vst.msk [vmem:[#allocation2 + $0x17] sm:$0xfe] %vm461, %v426
      %470 = vst.msk [vmem:[#allocation2 + $0x1f] sm:$0x1] %vm463, %v428
      %471 = vst.msk [vmem:[#allocation2 + $0x1f] sm:$0xfe] %vm461, %v430
      %472 = vst.msk [vmem:[#allocation2 + $0x27] sm:$0x1] %vm463, %v432
      %473 = vst.msk [vmem:[#allocation2 + $0x27] sm:$0xfe] %vm461, %v434
      %474 = vst.msk [vmem:[#allocation2 + $0x2f] sm:$0x1] %vm463, %v436
      %475 = vst.msk [vmem:[#allocation2 + $0x2f] sm:$0xfe] %vm461, %v438
      %476 = vst.msk [vmem:[#allocation2 + $0x37] sm:$0x1] %vm463, %v440
      %477 = vst.msk [vmem:[#allocation2 + $0x37] sm:$0xfe] %vm461, %v442
      %478 = vst.msk [vmem:[#allocation2 + $0x3f] sm:$0x1] %vm463, %v444
      %s479 = scalar_lea.vmem %s203, 144
      %v480 = vld [vmem:[%s479] sm:$0xff]
      %v481 = vld [vmem:[%s479 + $0x8] sm:$0x1]
      %v482 = vld [vmem:[%s479 + $0x10] sm:$0xff]
      %v483 = vld [vmem:[%s479 + $0x18] sm:$0x1]
      %v484 = vld [vmem:[%s479 + $0x20] sm:$0xff]
      %v485 = vld [vmem:[%s479 + $0x28] sm:$0x1]
      %v486 = vld [vmem:[%s479 + $0x30] sm:$0xff]
      %v487 = vld [vmem:[%s479 + $0x38] sm:$0x1]
      %v488 = vld [vmem:[%s479 + $0x40] sm:$0xff]
      %v489 = vld [vmem:[%s479 + $0x48] sm:$0x1]
      %v490 = vld [vmem:[%s479 + $0x50] sm:$0xff]
      %v491 = vld [vmem:[%s479 + $0x58] sm:$0x1]
      %v492 = vld [vmem:[%s479 + $0x60] sm:$0xff]
      %v493 = vld [vmem:[%s479 + $0x68] sm:$0x1]
      %v494 = vld [vmem:[%s479 + $0x70] sm:$0xff]
      %v495 = vld [vmem:[%s479 + $0x78] sm:$0x1]
      %v496 = vld [vmem:[%s479 + $0x80] sm:$0xff]
      %v497 = vld [vmem:[%s479 + $0x88] sm:$0x1]
      %vm498 = vcmp.gt.f32.partialorder %v480, 0.0
      %vm499 = vcmp.gt.f32.partialorder %v481, 0.0
      %vm500 = vcmp.gt.f32.partialorder %v482, 0.0
      %vm501 = vcmp.gt.f32.partialorder %v483, 0.0
      %vm502 = vcmp.gt.f32.partialorder %v484, 0.0
      %vm503 = vcmp.gt.f32.partialorder %v485, 0.0
      %vm504 = vcmp.gt.f32.partialorder %v486, 0.0
      %vm505 = vcmp.gt.f32.partialorder %v487, 0.0
      %vm506 = vcmp.gt.f32.partialorder %v488, 0.0
      %vm507 = vcmp.gt.f32.partialorder %v489, 0.0
      %vm508 = vcmp.gt.f32.partialorder %v490, 0.0
      %vm509 = vcmp.gt.f32.partialorder %v491, 0.0
      %vm510 = vcmp.gt.f32.partialorder %v492, 0.0
      %vm511 = vcmp.gt.f32.partialorder %v493, 0.0
      %vm512 = vcmp.gt.f32.partialorder %v494, 0.0
      %vm513 = vcmp.gt.f32.partialorder %v495, 0.0
      %vm514 = vcmp.gt.f32.partialorder %v496, 0.0
      %vm515 = vcmp.gt.f32.partialorder %v497, 0.0
      %v516 = vmul.f32 %v480, 0.2
      %v517 = vmul.f32 %v481, 0.2
      %v518 = vmul.f32 %v482, 0.2
      %v519 = vmul.f32 %v483, 0.2
      %v520 = vmul.f32 %v484, 0.2
      %v521 = vmul.f32 %v485, 0.2
      %v522 = vmul.f32 %v486, 0.2
      %v523 = vmul.f32 %v487, 0.2
      %v524 = vmul.f32 %v488, 0.2
      %v525 = vmul.f32 %v489, 0.2
      %v526 = vmul.f32 %v490, 0.2
      %v527 = vmul.f32 %v491, 0.2
      %v528 = vmul.f32 %v492, 0.2
      %v529 = vmul.f32 %v493, 0.2
      %v530 = vmul.f32 %v494, 0.2
      %v531 = vmul.f32 %v495, 0.2
      %v532 = vmul.f32 %v496, 0.2
      %v533 = vmul.f32 %v497, 0.2
      %v534 = vsel %vm498, %v480, %v516
      %v535 = vsel %vm499, %v481, %v517
      %v536 = vsel %vm500, %v482, %v518
      %v537 = vsel %vm501, %v483, %v519
      %v538 = vsel %vm502, %v484, %v520
      %v539 = vsel %vm503, %v485, %v521
      %v540 = vsel %vm504, %v486, %v522
      %v541 = vsel %vm505, %v487, %v523
      %v542 = vsel %vm506, %v488, %v524
      %v543 = vsel %vm507, %v489, %v525
      %v544 = vsel %vm508, %v490, %v526
      %v545 = vsel %vm509, %v491, %v527
      %v546 = vsel %vm510, %v492, %v528
      %v547 = vsel %vm511, %v493, %v529
      %v548 = vsel %vm512, %v494, %v530
      %v549 = vsel %vm513, %v495, %v531
      %v550 = vsel %vm514, %v496, %v532
      %v551 = vsel %vm515, %v497, %v533
      %560 = vrot.lane.b32.xlu0 %v534, 4
      %v561 = vpop.permute.xlu0 %560
      %562 = vrot.lane.b32.xlu0 %v536, 4
      %v563 = vpop.permute.xlu0 %562
      %564 = vrot.lane.b32.xlu0 %v538, 4
      %v565 = vpop.permute.xlu0 %564
      %566 = vrot.lane.b32.xlu0 %v540, 4
      %v567 = vpop.permute.xlu0 %566
      %568 = vrot.lane.b32.xlu0 %v542, 4
      %v569 = vpop.permute.xlu0 %568
      %570 = vrot.lane.b32.xlu0 %v544, 4
      %v571 = vpop.permute.xlu0 %570
      %572 = vrot.lane.b32.xlu0 %v546, 4
      %v573 = vpop.permute.xlu0 %572
      %574 = vrot.lane.b32.xlu0 %v548, 4
      %v575 = vpop.permute.xlu0 %574
      %vm584 = vcmask 64544
      %585 = vst.msk [vmem:[#allocation2] sm:$0xff] %vm584, %v561
      %586 = vst.msk [vmem:[#allocation2 + $0x8] sm:$0xff] %vm584, %v563
      %587 = vst.msk [vmem:[#allocation2 + $0x10] sm:$0xff] %vm584, %v565
      %588 = vst.msk [vmem:[#allocation2 + $0x18] sm:$0xff] %vm584, %v567
      %589 = vst.msk [vmem:[#allocation2 + $0x20] sm:$0xff] %vm584, %v569
      %590 = vst.msk [vmem:[#allocation2 + $0x28] sm:$0xff] %vm584, %v571
      %591 = vst.msk [vmem:[#allocation2 + $0x30] sm:$0xff] %vm584, %v573
      %592 = vst.msk [vmem:[#allocation2 + $0x38] sm:$0xff] %vm584, %v575
      %601 = vrot.lane.b32.xlu0 %v534, 12
      %v602 = vpop.permute.xlu0 %601
      %603 = vrot.lane.b32.xlu0 %v535, 12
      %v604 = vpop.permute.xlu0 %603
      %605 = vrot.lane.b32.xlu0 %v536, 12
      %v606 = vpop.permute.xlu0 %605
      %607 = vrot.lane.b32.xlu0 %v537, 12
      %v608 = vpop.permute.xlu0 %607
      %609 = vrot.lane.b32.xlu0 %v538, 12
      %v610 = vpop.permute.xlu0 %609
      %611 = vrot.lane.b32.xlu0 %v539, 12
      %v612 = vpop.permute.xlu0 %611
      %613 = vrot.lane.b32.xlu0 %v540, 12
      %v614 = vpop.permute.xlu0 %613
      %615 = vrot.lane.b32.xlu0 %v541, 12
      %v616 = vpop.permute.xlu0 %615
      %617 = vrot.lane.b32.xlu0 %v542, 12
      %v618 = vpop.permute.xlu0 %617
      %619 = vrot.lane.b32.xlu0 %v543, 12
      %v620 = vpop.permute.xlu0 %619
      %621 = vrot.lane.b32.xlu0 %v544, 12
      %v622 = vpop.permute.xlu0 %621
      %623 = vrot.lane.b32.xlu0 %v545, 12
      %v624 = vpop.permute.xlu0 %623
      %625 = vrot.lane.b32.xlu0 %v546, 12
      %v626 = vpop.permute.xlu0 %625
      %627 = vrot.lane.b32.xlu0 %v547, 12
      %v628 = vpop.permute.xlu0 %627
      %629 = vrot.lane.b32.xlu0 %v548, 12
      %v630 = vpop.permute.xlu0 %629
      %631 = vrot.lane.b32.xlu0 %v549, 12
      %v632 = vpop.permute.xlu0 %631
      %vm649 = vcmask 130145
      %650 = vst.msk [vmem:[#allocation2 - $0x1] sm:$0xfe] %vm649, %v602
      %vm651 = vcmask 122976
      %652 = vst.msk [vmem:[#allocation2 + $0x7] sm:$0x1] %vm651, %v604
      %653 = vst.msk [vmem:[#allocation2 + $0x7] sm:$0xfe] %vm649, %v606
      %654 = vst.msk [vmem:[#allocation2 + $0xf] sm:$0x1] %vm651, %v608
      %655 = vst.msk [vmem:[#allocation2 + $0xf] sm:$0xfe] %vm649, %v610
      %656 = vst.msk [vmem:[#allocation2 + $0x17] sm:$0x1] %vm651, %v612
      %657 = vst.msk [vmem:[#allocation2 + $0x17] sm:$0xfe] %vm649, %v614
      %658 = vst.msk [vmem:[#allocation2 + $0x1f] sm:$0x1] %vm651, %v616
      %659 = vst.msk [vmem:[#allocation2 + $0x1f] sm:$0xfe] %vm649, %v618
      %660 = vst.msk [vmem:[#allocation2 + $0x27] sm:$0x1] %vm651, %v620
      %661 = vst.msk [vmem:[#allocation2 + $0x27] sm:$0xfe] %vm649, %v622
      %662 = vst.msk [vmem:[#allocation2 + $0x2f] sm:$0x1] %vm651, %v624
      %663 = vst.msk [vmem:[#allocation2 + $0x2f] sm:$0xfe] %vm649, %v626
      %664 = vst.msk [vmem:[#allocation2 + $0x37] sm:$0x1] %vm651, %v628
      %665 = vst.msk [vmem:[#allocation2 + $0x37] sm:$0xfe] %vm649, %v630
      %666 = vst.msk [vmem:[#allocation2 + $0x3f] sm:$0x1] %vm651, %v632
      %668 = vrot.lane.b32.xlu0 %v536, 36
      %v669 = vpop.permute.xlu0 %668
      %670 = vrot.lane.b32.xlu0 %v538, 36
      %v671 = vpop.permute.xlu0 %670
      %672 = vrot.lane.b32.xlu0 %v540, 36
      %v673 = vpop.permute.xlu0 %672
      %674 = vrot.lane.b32.xlu0 %v542, 36
      %v675 = vpop.permute.xlu0 %674
      %676 = vrot.lane.b32.xlu0 %v544, 36
      %v677 = vpop.permute.xlu0 %676
      %678 = vrot.lane.b32.xlu0 %v546, 36
      %v679 = vpop.permute.xlu0 %678
      %680 = vrot.lane.b32.xlu0 %v548, 36
      %v681 = vpop.permute.xlu0 %680
      %682 = vrot.lane.b32.xlu0 %v550, 36
      %v683 = vpop.permute.xlu0 %682
      %vm692 = vcmask 326944
      %693 = vst.msk [vmem:[#allocation2] sm:$0xff] %vm692, %v669
      %694 = vst.msk [vmem:[#allocation2 + $0x8] sm:$0xff] %vm692, %v671
      %695 = vst.msk [vmem:[#allocation2 + $0x10] sm:$0xff] %vm692, %v673
      %696 = vst.msk [vmem:[#allocation2 + $0x18] sm:$0xff] %vm692, %v675
      %697 = vst.msk [vmem:[#allocation2 + $0x20] sm:$0xff] %vm692, %v677
      %698 = vst.msk [vmem:[#allocation2 + $0x28] sm:$0xff] %vm692, %v679
      %699 = vst.msk [vmem:[#allocation2 + $0x30] sm:$0xff] %vm692, %v681
      %700 = vst.msk [vmem:[#allocation2 + $0x38] sm:$0xff] %vm692, %v683
      %702 = vrot.lane.b32.xlu0 %v536, 44
      %v703 = vpop.permute.xlu0 %702
      %704 = vrot.lane.b32.xlu0 %v537, 44
      %v705 = vpop.permute.xlu0 %704
      %706 = vrot.lane.b32.xlu0 %v538, 44
      %v707 = vpop.permute.xlu0 %706
      %708 = vrot.lane.b32.xlu0 %v539, 44
      %v709 = vpop.permute.xlu0 %708
      %710 = vrot.lane.b32.xlu0 %v540, 44
      %v711 = vpop.permute.xlu0 %710
      %712 = vrot.lane.b32.xlu0 %v541, 44
      %v713 = vpop.permute.xlu0 %712
      %714 = vrot.lane.b32.xlu0 %v542, 44
      %v715 = vpop.permute.xlu0 %714
      %716 = vrot.lane.b32.xlu0 %v543, 44
      %v717 = vpop.permute.xlu0 %716
      %718 = vrot.lane.b32.xlu0 %v544, 44
      %v719 = vpop.permute.xlu0 %718
      %720 = vrot.lane.b32.xlu0 %v545, 44
      %v721 = vpop.permute.xlu0 %720
      %722 = vrot.lane.b32.xlu0 %v546, 44
      %v723 = vpop.permute.xlu0 %722
      %724 = vrot.lane.b32.xlu0 %v547, 44
      %v725 = vpop.permute.xlu0 %724
      %726 = vrot.lane.b32.xlu0 %v548, 44
      %v727 = vpop.permute.xlu0 %726
      %728 = vrot.lane.b32.xlu0 %v549, 44
      %v729 = vpop.permute.xlu0 %728
      %730 = vrot.lane.b32.xlu0 %v550, 44
      %v731 = vpop.permute.xlu0 %730
      %732 = vrot.lane.b32.xlu0 %v551, 44
      %v733 = vpop.permute.xlu0 %732
      %vm750 = vcmask 392545
      %751 = vst.msk [vmem:[#allocation2 - $0x1] sm:$0xfe] %vm750, %v703
      %vm752 = vcmask 385376
      %753 = vst.msk [vmem:[#allocation2 + $0x7] sm:$0x1] %vm752, %v705
      %754 = vst.msk [vmem:[#allocation2 + $0x7] sm:$0xfe] %vm750, %v707
      %755 = vst.msk [vmem:[#allocation2 + $0xf] sm:$0x1] %vm752, %v709
      %756 = vst.msk [vmem:[#allocation2 + $0xf] sm:$0xfe] %vm750, %v711
      %757 = vst.msk [vmem:[#allocation2 + $0x17] sm:$0x1] %vm752, %v713
      %758 = vst.msk [vmem:[#allocation2 + $0x17] sm:$0xfe] %vm750, %v715
      %759 = vst.msk [vmem:[#allocation2 + $0x1f] sm:$0x1] %vm752, %v717
      %760 = vst.msk [vmem:[#allocation2 + $0x1f] sm:$0xfe] %vm750, %v719
      %761 = vst.msk [vmem:[#allocation2 + $0x27] sm:$0x1] %vm752, %v721
      %762 = vst.msk [vmem:[#allocation2 + $0x27] sm:$0xfe] %vm750, %v723
      %763 = vst.msk [vmem:[#allocation2 + $0x2f] sm:$0x1] %vm752, %v725
      %764 = vst.msk [vmem:[#allocation2 + $0x2f] sm:$0xfe] %vm750, %v727
      %765 = vst.msk [vmem:[#allocation2 + $0x37] sm:$0x1] %vm752, %v729
      %766 = vst.msk [vmem:[#allocation2 + $0x37] sm:$0xfe] %vm750, %v731
      %767 = vst.msk [vmem:[#allocation2 + $0x3f] sm:$0x1] %vm752, %v733
      %s768 = scalar_lea.vmem %s203, 288
      %v769 = vld [vmem:[%s768] sm:$0xff]
      %v770 = vld [vmem:[%s768 + $0x8] sm:$0x1]
      %v771 = vld [vmem:[%s768 + $0x10] sm:$0xff]
      %v772 = vld [vmem:[%s768 + $0x18] sm:$0x1]
      %v773 = vld [vmem:[%s768 + $0x20] sm:$0xff]
      %v774 = vld [vmem:[%s768 + $0x28] sm:$0x1]
      %v775 = vld [vmem:[%s768 + $0x30] sm:$0xff]
      %v776 = vld [vmem:[%s768 + $0x38] sm:$0x1]
      %v777 = vld [vmem:[%s768 + $0x40] sm:$0xff]
      %v778 = vld [vmem:[%s768 + $0x48] sm:$0x1]
      %v779 = vld [vmem:[%s768 + $0x50] sm:$0xff]
      %v780 = vld [vmem:[%s768 + $0x58] sm:$0x1]
      %v781 = vld [vmem:[%s768 + $0x60] sm:$0xff]
      %v782 = vld [vmem:[%s768 + $0x68] sm:$0x1]
      %v783 = vld [vmem:[%s768 + $0x70] sm:$0xff]
      %v784 = vld [vmem:[%s768 + $0x78] sm:$0x1]
      %v785 = vld [vmem:[%s768 + $0x80] sm:$0xff]
      %v786 = vld [vmem:[%s768 + $0x88] sm:$0x1]
      %vm787 = vcmp.gt.f32.partialorder %v769, 0.0
      %vm788 = vcmp.gt.f32.partialorder %v770, 0.0
      %vm789 = vcmp.gt.f32.partialorder %v771, 0.0
      %vm790 = vcmp.gt.f32.partialorder %v772, 0.0
      %vm791 = vcmp.gt.f32.partialorder %v773, 0.0
      %vm792 = vcmp.gt.f32.partialorder %v774, 0.0
      %vm793 = vcmp.gt.f32.partialorder %v775, 0.0
      %vm794 = vcmp.gt.f32.partialorder %v776, 0.0
      %vm795 = vcmp.gt.f32.partialorder %v777, 0.0
      %vm796 = vcmp.gt.f32.partialorder %v778, 0.0
      %vm797 = vcmp.gt.f32.partialorder %v779, 0.0
      %vm798 = vcmp.gt.f32.partialorder %v780, 0.0
      %vm799 = vcmp.gt.f32.partialorder %v781, 0.0
      %vm800 = vcmp.gt.f32.partialorder %v782, 0.0
      %vm801 = vcmp.gt.f32.partialorder %v783, 0.0
      %vm802 = vcmp.gt.f32.partialorder %v784, 0.0
      %vm803 = vcmp.gt.f32.partialorder %v785, 0.0
      %vm804 = vcmp.gt.f32.partialorder %v786, 0.0
      %v805 = vmul.f32 %v769, 0.2
      %v806 = vmul.f32 %v770, 0.2
      %v807 = vmul.f32 %v771, 0.2
      %v808 = vmul.f32 %v772, 0.2
      %v809 = vmul.f32 %v773, 0.2
      %v810 = vmul.f32 %v774, 0.2
      %v811 = vmul.f32 %v775, 0.2
      %v812 = vmul.f32 %v776, 0.2
      %v813 = vmul.f32 %v777, 0.2
      %v814 = vmul.f32 %v778, 0.2
      %v815 = vmul.f32 %v779, 0.2
      %v816 = vmul.f32 %v780, 0.2
      %v817 = vmul.f32 %v781, 0.2
      %v818 = vmul.f32 %v782, 0.2
      %v819 = vmul.f32 %v783, 0.2
      %v820 = vmul.f32 %v784, 0.2
      %v821 = vmul.f32 %v785, 0.2
      %v822 = vmul.f32 %v786, 0.2
      %v823 = vsel %vm787, %v769, %v805
      %v824 = vsel %vm788, %v770, %v806
      %v825 = vsel %vm789, %v771, %v807
      %v826 = vsel %vm790, %v772, %v808
      %v827 = vsel %vm791, %v773, %v809
      %v828 = vsel %vm792, %v774, %v810
      %v829 = vsel %vm793, %v775, %v811
      %v830 = vsel %vm794, %v776, %v812
      %v831 = vsel %vm795, %v777, %v813
      %v832 = vsel %vm796, %v778, %v814
      %v833 = vsel %vm797, %v779, %v815
      %v834 = vsel %vm798, %v780, %v816
      %v835 = vsel %vm799, %v781, %v817
      %v836 = vsel %vm800, %v782, %v818
      %v837 = vsel %vm801, %v783, %v819
      %v838 = vsel %vm802, %v784, %v820
      %v839 = vsel %vm803, %v785, %v821
      %v840 = vsel %vm804, %v786, %v822
      %849 = vrot.lane.b32.xlu0 %v823, 16
      %v850 = vpop.permute.xlu0 %849
      %851 = vrot.lane.b32.xlu0 %v825, 16
      %v852 = vpop.permute.xlu0 %851
      %853 = vrot.lane.b32.xlu0 %v827, 16
      %v854 = vpop.permute.xlu0 %853
      %855 = vrot.lane.b32.xlu0 %v829, 16
      %v856 = vpop.permute.xlu0 %855
      %857 = vrot.lane.b32.xlu0 %v831, 16
      %v858 = vpop.permute.xlu0 %857
      %859 = vrot.lane.b32.xlu0 %v833, 16
      %v860 = vpop.permute.xlu0 %859
      %861 = vrot.lane.b32.xlu0 %v835, 16
      %v862 = vpop.permute.xlu0 %861
      %863 = vrot.lane.b32.xlu0 %v837, 16
      %v864 = vpop.permute.xlu0 %863
      %vm873 = vcmask 162944
      %874 = vst.msk [vmem:[#allocation2] sm:$0xff] %vm873, %v850
      %875 = vst.msk [vmem:[#allocation2 + $0x8] sm:$0xff] %vm873, %v852
      %876 = vst.msk [vmem:[#allocation2 + $0x10] sm:$0xff] %vm873, %v854
      %877 = vst.msk [vmem:[#allocation2 + $0x18] sm:$0xff] %vm873, %v856
      %878 = vst.msk [vmem:[#allocation2 + $0x20] sm:$0xff] %vm873, %v858
      %879 = vst.msk [vmem:[#allocation2 + $0x28] sm:$0xff] %vm873, %v860
      %880 = vst.msk [vmem:[#allocation2 + $0x30] sm:$0xff] %vm873, %v862
      %881 = vst.msk [vmem:[#allocation2 + $0x38] sm:$0xff] %vm873, %v864
      %890 = vrot.lane.b32.xlu0 %v823, 24
      %v891 = vpop.permute.xlu0 %890
      %892 = vrot.lane.b32.xlu0 %v824, 24
      %v893 = vpop.permute.xlu0 %892
      %894 = vrot.lane.b32.xlu0 %v825, 24
      %v895 = vpop.permute.xlu0 %894
      %896 = vrot.lane.b32.xlu0 %v826, 24
      %v897 = vpop.permute.xlu0 %896
      %898 = vrot.lane.b32.xlu0 %v827, 24
      %v899 = vpop.permute.xlu0 %898
      %900 = vrot.lane.b32.xlu0 %v828, 24
      %v901 = vpop.permute.xlu0 %900
      %902 = vrot.lane.b32.xlu0 %v829, 24
      %v903 = vpop.permute.xlu0 %902
      %904 = vrot.lane.b32.xlu0 %v830, 24
      %v905 = vpop.permute.xlu0 %904
      %906 = vrot.lane.b32.xlu0 %v831, 24
      %v907 = vpop.permute.xlu0 %906
      %908 = vrot.lane.b32.xlu0 %v832, 24
      %v909 = vpop.permute.xlu0 %908
      %910 = vrot.lane.b32.xlu0 %v833, 24
      %v911 = vpop.permute.xlu0 %910
      %912 = vrot.lane.b32.xlu0 %v834, 24
      %v913 = vpop.permute.xlu0 %912
      %914 = vrot.lane.b32.xlu0 %v835, 24
      %v915 = vpop.permute.xlu0 %914
      %916 = vrot.lane.b32.xlu0 %v836, 24
      %v917 = vpop.permute.xlu0 %916
      %918 = vrot.lane.b32.xlu0 %v837, 24
      %v919 = vpop.permute.xlu0 %918
      %920 = vrot.lane.b32.xlu0 %v838, 24
      %v921 = vpop.permute.xlu0 %920
      %vm938 = vcmask 228545
      %939 = vst.msk [vmem:[#allocation2 - $0x1] sm:$0xfe] %vm938, %v891
      %vm940 = vcmask 221376
      %941 = vst.msk [vmem:[#allocation2 + $0x7] sm:$0x1] %vm940, %v893
      %942 = vst.msk [vmem:[#allocation2 + $0x7] sm:$0xfe] %vm938, %v895
      %943 = vst.msk [vmem:[#allocation2 + $0xf] sm:$0x1] %vm940, %v897
      %944 = vst.msk [vmem:[#allocation2 + $0xf] sm:$0xfe] %vm938, %v899
      %945 = vst.msk [vmem:[#allocation2 + $0x17] sm:$0x1] %vm940, %v901
      %946 = vst.msk [vmem:[#allocation2 + $0x17] sm:$0xfe] %vm938, %v903
      %947 = vst.msk [vmem:[#allocation2 + $0x1f] sm:$0x1] %vm940, %v905
      %948 = vst.msk [vmem:[#allocation2 + $0x1f] sm:$0xfe] %vm938, %v907
      %949 = vst.msk [vmem:[#allocation2 + $0x27] sm:$0x1] %vm940, %v909
      %950 = vst.msk [vmem:[#allocation2 + $0x27] sm:$0xfe] %vm938, %v911
      %951 = vst.msk [vmem:[#allocation2 + $0x2f] sm:$0x1] %vm940, %v913
      %952 = vst.msk [vmem:[#allocation2 + $0x2f] sm:$0xfe] %vm938, %v915
      %953 = vst.msk [vmem:[#allocation2 + $0x37] sm:$0x1] %vm940, %v917
      %954 = vst.msk [vmem:[#allocation2 + $0x37] sm:$0xfe] %vm938, %v919
      %955 = vst.msk [vmem:[#allocation2 + $0x3f] sm:$0x1] %vm940, %v921
      %957 = vrot.lane.b32.xlu0 %v825, 48
      %v958 = vpop.permute.xlu0 %957
      %959 = vrot.lane.b32.xlu0 %v827, 48
      %v960 = vpop.permute.xlu0 %959
      %961 = vrot.lane.b32.xlu0 %v829, 48
      %v962 = vpop.permute.xlu0 %961
      %963 = vrot.lane.b32.xlu0 %v831, 48
      %v964 = vpop.permute.xlu0 %963
      %965 = vrot.lane.b32.xlu0 %v833, 48
      %v966 = vpop.permute.xlu0 %965
      %967 = vrot.lane.b32.xlu0 %v835, 48
      %v968 = vpop.permute.xlu0 %967
      %969 = vrot.lane.b32.xlu0 %v837, 48
      %v970 = vpop.permute.xlu0 %969
      %971 = vrot.lane.b32.xlu0 %v839, 48
      %v972 = vpop.permute.xlu0 %971
      %vm981 = vcmask 425344
      %982 = vst.msk [vmem:[#allocation2] sm:$0xff] %vm981, %v958
      %983 = vst.msk [vmem:[#allocation2 + $0x8] sm:$0xff] %vm981, %v960
      %984 = vst.msk [vmem:[#allocation2 + $0x10] sm:$0xff] %vm981, %v962
      %985 = vst.msk [vmem:[#allocation2 + $0x18] sm:$0xff] %vm981, %v964
      %986 = vst.msk [vmem:[#allocation2 + $0x20] sm:$0xff] %vm981, %v966
      %987 = vst.msk [vmem:[#allocation2 + $0x28] sm:$0xff] %vm981, %v968
      %988 = vst.msk [vmem:[#allocation2 + $0x30] sm:$0xff] %vm981, %v970
      %989 = vst.msk [vmem:[#allocation2 + $0x38] sm:$0xff] %vm981, %v972
      %991 = vrot.lane.b32.xlu0 %v825, 56
      %v992 = vpop.permute.xlu0 %991
      %993 = vrot.lane.b32.xlu0 %v826, 56
      %v994 = vpop.permute.xlu0 %993
      %995 = vrot.lane.b32.xlu0 %v827, 56
      %v996 = vpop.permute.xlu0 %995
      %997 = vrot.lane.b32.xlu0 %v828, 56
      %v998 = vpop.permute.xlu0 %997
      %999 = vrot.lane.b32.xlu0 %v829, 56
      %v1000 = vpop.permute.xlu0 %999
      %1001 = vrot.lane.b32.xlu0 %v830, 56
      %v1002 = vpop.permute.xlu0 %1001
      %1003 = vrot.lane.b32.xlu0 %v831, 56
      %v1004 = vpop.permute.xlu0 %1003
      %1005 = vrot.lane.b32.xlu0 %v832, 56
      %v1006 = vpop.permute.xlu0 %1005
      %1007 = vrot.lane.b32.xlu0 %v833, 56
      %v1008 = vpop.permute.xlu0 %1007
      %1009 = vrot.lane.b32.xlu0 %v834, 56
      %v1010 = vpop.permute.xlu0 %1009
      %1011 = vrot.lane.b32.xlu0 %v835, 56
      %v1012 = vpop.permute.xlu0 %1011
      %1013 = vrot.lane.b32.xlu0 %v836, 56
      %v1014 = vpop.permute.xlu0 %1013
      %1015 = vrot.lane.b32.xlu0 %v837, 56
      %v1016 = vpop.permute.xlu0 %1015
      %1017 = vrot.lane.b32.xlu0 %v838, 56
      %v1018 = vpop.permute.xlu0 %1017
      %1019 = vrot.lane.b32.xlu0 %v839, 56
      %v1020 = vpop.permute.xlu0 %1019
      %1021 = vrot.lane.b32.xlu0 %v840, 56
      %v1022 = vpop.permute.xlu0 %1021
      %vm1039 = vcmask 490945
      %1040 = vst.msk [vmem:[#allocation2 - $0x1] sm:$0xfe] %vm1039, %v992
      %vm1041 = vcmask 483776
      %1042 = vst.msk [vmem:[#allocation2 + $0x7] sm:$0x1] %vm1041, %v994
      %1043 = vst.msk [vmem:[#allocation2 + $0x7] sm:$0xfe] %vm1039, %v996
      %1044 = vst.msk [vmem:[#allocation2 + $0xf] sm:$0x1] %vm1041, %v998
      %1045 = vst.msk [vmem:[#allocation2 + $0xf] sm:$0xfe] %vm1039, %v1000
      %1046 = vst.msk [vmem:[#allocation2 + $0x17] sm:$0x1] %vm1041, %v1002
      %1047 = vst.msk [vmem:[#allocation2 + $0x17] sm:$0xfe] %vm1039, %v1004
      %1048 = vst.msk [vmem:[#allocation2 + $0x1f] sm:$0x1] %vm1041, %v1006
      %1049 = vst.msk [vmem:[#allocation2 + $0x1f] sm:$0xfe] %vm1039, %v1008
      %1050 = vst.msk [vmem:[#allocation2 + $0x27] sm:$0x1] %vm1041, %v1010
      %1051 = vst.msk [vmem:[#allocation2 + $0x27] sm:$0xfe] %vm1039, %v1012
      %1052 = vst.msk [vmem:[#allocation2 + $0x2f] sm:$0x1] %vm1041, %v1014
      %1053 = vst.msk [vmem:[#allocation2 + $0x2f] sm:$0xfe] %vm1039, %v1016
      %1054 = vst.msk [vmem:[#allocation2 + $0x37] sm:$0x1] %vm1041, %v1018
      %1055 = vst.msk [vmem:[#allocation2 + $0x37] sm:$0xfe] %vm1039, %v1020
      %1056 = vst.msk [vmem:[#allocation2 + $0x3f] sm:$0x1] %vm1041, %v1022
      %s1057 = scalar_lea.vmem %s203, 432
      %v1058 = vld [vmem:[%s1057] sm:$0xff]
      %v1059 = vld [vmem:[%s1057 + $0x8] sm:$0x1]
      %v1060 = vld [vmem:[%s1057 + $0x10] sm:$0xff]
      %v1061 = vld [vmem:[%s1057 + $0x18] sm:$0x1]
      %v1062 = vld [vmem:[%s1057 + $0x20] sm:$0xff]
      %v1063 = vld [vmem:[%s1057 + $0x28] sm:$0x1]
      %v1064 = vld [vmem:[%s1057 + $0x30] sm:$0xff]
      %v1065 = vld [vmem:[%s1057 + $0x38] sm:$0x1]
      %v1066 = vld [vmem:[%s1057 + $0x40] sm:$0xff]
      %v1067 = vld [vmem:[%s1057 + $0x48] sm:$0x1]
      %v1068 = vld [vmem:[%s1057 + $0x50] sm:$0xff]
      %v1069 = vld [vmem:[%s1057 + $0x58] sm:$0x1]
      %v1070 = vld [vmem:[%s1057 + $0x60] sm:$0xff]
      %v1071 = vld [vmem:[%s1057 + $0x68] sm:$0x1]
      %v1072 = vld [vmem:[%s1057 + $0x70] sm:$0xff]
      %v1073 = vld [vmem:[%s1057 + $0x78] sm:$0x1]
      %v1074 = vld [vmem:[%s1057 + $0x80] sm:$0xff]
      %v1075 = vld [vmem:[%s1057 + $0x88] sm:$0x1]
      %vm1076 = vcmp.gt.f32.partialorder %v1058, 0.0
      %vm1077 = vcmp.gt.f32.partialorder %v1059, 0.0
      %vm1078 = vcmp.gt.f32.partialorder %v1060, 0.0
      %vm1079 = vcmp.gt.f32.partialorder %v1061, 0.0
      %vm1080 = vcmp.gt.f32.partialorder %v1062, 0.0
      %vm1081 = vcmp.gt.f32.partialorder %v1063, 0.0
      %vm1082 = vcmp.gt.f32.partialorder %v1064, 0.0
      %vm1083 = vcmp.gt.f32.partialorder %v1065, 0.0
      %vm1084 = vcmp.gt.f32.partialorder %v1066, 0.0
      %vm1085 = vcmp.gt.f32.partialorder %v1067, 0.0
      %vm1086 = vcmp.gt.f32.partialorder %v1068, 0.0
      %vm1087 = vcmp.gt.f32.partialorder %v1069, 0.0
      %vm1088 = vcmp.gt.f32.partialorder %v1070, 0.0
      %vm1089 = vcmp.gt.f32.partialorder %v1071, 0.0
      %vm1090 = vcmp.gt.f32.partialorder %v1072, 0.0
      %vm1091 = vcmp.gt.f32.partialorder %v1073, 0.0
      %vm1092 = vcmp.gt.f32.partialorder %v1074, 0.0
      %vm1093 = vcmp.gt.f32.partialorder %v1075, 0.0
      %v1094 = vmul.f32 %v1058, 0.2
      %v1095 = vmul.f32 %v1059, 0.2
      %v1096 = vmul.f32 %v1060, 0.2
      %v1097 = vmul.f32 %v1061, 0.2
      %v1098 = vmul.f32 %v1062, 0.2
      %v1099 = vmul.f32 %v1063, 0.2
      %v1100 = vmul.f32 %v1064, 0.2
      %v1101 = vmul.f32 %v1065, 0.2
      %v1102 = vmul.f32 %v1066, 0.2
      %v1103 = vmul.f32 %v1067, 0.2
      %v1104 = vmul.f32 %v1068, 0.2
      %v1105 = vmul.f32 %v1069, 0.2
      %v1106 = vmul.f32 %v1070, 0.2
      %v1107 = vmul.f32 %v1071, 0.2
      %v1108 = vmul.f32 %v1072, 0.2
      %v1109 = vmul.f32 %v1073, 0.2
      %v1110 = vmul.f32 %v1074, 0.2
      %v1111 = vmul.f32 %v1075, 0.2
      %v1112 = vsel %vm1076, %v1058, %v1094
      %v1113 = vsel %vm1077, %v1059, %v1095
      %v1114 = vsel %vm1078, %v1060, %v1096
      %v1115 = vsel %vm1079, %v1061, %v1097
      %v1116 = vsel %vm1080, %v1062, %v1098
      %v1117 = vsel %vm1081, %v1063, %v1099
      %v1118 = vsel %vm1082, %v1064, %v1100
      %v1119 = vsel %vm1083, %v1065, %v1101
      %v1120 = vsel %vm1084, %v1066, %v1102
      %v1121 = vsel %vm1085, %v1067, %v1103
      %v1122 = vsel %vm1086, %v1068, %v1104
      %v1123 = vsel %vm1087, %v1069, %v1105
      %v1124 = vsel %vm1088, %v1070, %v1106
      %v1125 = vsel %vm1089, %v1071, %v1107
      %v1126 = vsel %vm1090, %v1072, %v1108
      %v1127 = vsel %vm1091, %v1073, %v1109
      %v1128 = vsel %vm1092, %v1074, %v1110
      %v1129 = vsel %vm1093, %v1075, %v1111
      %1138 = vrot.lane.b32.xlu0 %v1112, 20
      %v1139 = vpop.permute.xlu0 %1138
      %1140 = vrot.lane.b32.xlu0 %v1114, 20
      %v1141 = vpop.permute.xlu0 %1140
      %1142 = vrot.lane.b32.xlu0 %v1116, 20
      %v1143 = vpop.permute.xlu0 %1142
      %1144 = vrot.lane.b32.xlu0 %v1118, 20
      %v1145 = vpop.permute.xlu0 %1144
      %1146 = vrot.lane.b32.xlu0 %v1120, 20
      %v1147 = vpop.permute.xlu0 %1146
      %1148 = vrot.lane.b32.xlu0 %v1122, 20
      %v1149 = vpop.permute.xlu0 %1148
      %1150 = vrot.lane.b32.xlu0 %v1124, 20
      %v1151 = vpop.permute.xlu0 %1150
      %1152 = vrot.lane.b32.xlu0 %v1126, 20
      %v1153 = vpop.permute.xlu0 %1152
      %vm1162 = vcmask 195744
      %1163 = vst.msk [vmem:[#allocation2] sm:$0xff] %vm1162, %v1139
      %1164 = vst.msk [vmem:[#allocation2 + $0x8] sm:$0xff] %vm1162, %v1141
      %1165 = vst.msk [vmem:[#allocation2 + $0x10] sm:$0xff] %vm1162, %v1143
      %1166 = vst.msk [vmem:[#allocation2 + $0x18] sm:$0xff] %vm1162, %v1145
      %1167 = vst.msk [vmem:[#allocation2 + $0x20] sm:$0xff] %vm1162, %v1147
      %1168 = vst.msk [vmem:[#allocation2 + $0x28] sm:$0xff] %vm1162, %v1149
      %1169 = vst.msk [vmem:[#allocation2 + $0x30] sm:$0xff] %vm1162, %v1151
      %1170 = vst.msk [vmem:[#allocation2 + $0x38] sm:$0xff] %vm1162, %v1153
      %1179 = vrot.lane.b32.xlu0 %v1112, 28
      %v1180 = vpop.permute.xlu0 %1179
      %1181 = vrot.lane.b32.xlu0 %v1113, 28
      %v1182 = vpop.permute.xlu0 %1181
      %1183 = vrot.lane.b32.xlu0 %v1114, 28
      %v1184 = vpop.permute.xlu0 %1183
      %1185 = vrot.lane.b32.xlu0 %v1115, 28
      %v1186 = vpop.permute.xlu0 %1185
      %1187 = vrot.lane.b32.xlu0 %v1116, 28
      %v1188 = vpop.permute.xlu0 %1187
      %1189 = vrot.lane.b32.xlu0 %v1117, 28
      %v1190 = vpop.permute.xlu0 %1189
      %1191 = vrot.lane.b32.xlu0 %v1118, 28
      %v1192 = vpop.permute.xlu0 %1191
      %1193 = vrot.lane.b32.xlu0 %v1119, 28
      %v1194 = vpop.permute.xlu0 %1193
      %1195 = vrot.lane.b32.xlu0 %v1120, 28
      %v1196 = vpop.permute.xlu0 %1195
      %1197 = vrot.lane.b32.xlu0 %v1121, 28
      %v1198 = vpop.permute.xlu0 %1197
      %1199 = vrot.lane.b32.xlu0 %v1122, 28
      %v1200 = vpop.permute.xlu0 %1199
      %1201 = vrot.lane.b32.xlu0 %v1123, 28
      %v1202 = vpop.permute.xlu0 %1201
      %1203 = vrot.lane.b32.xlu0 %v1124, 28
      %v1204 = vpop.permute.xlu0 %1203
      %1205 = vrot.lane.b32.xlu0 %v1125, 28
      %v1206 = vpop.permute.xlu0 %1205
      %1207 = vrot.lane.b32.xlu0 %v1126, 28
      %v1208 = vpop.permute.xlu0 %1207
      %1209 = vrot.lane.b32.xlu0 %v1127, 28
      %v1210 = vpop.permute.xlu0 %1209
      %vm1227 = vcmask 261345
      %1228 = vst.msk [vmem:[#allocation2 - $0x1] sm:$0xfe] %vm1227, %v1180
      %vm1229 = vcmask 254176
      %1230 = vst.msk [vmem:[#allocation2 + $0x7] sm:$0x1] %vm1229, %v1182
      %1231 = vst.msk [vmem:[#allocation2 + $0x7] sm:$0xfe] %vm1227, %v1184
      %1232 = vst.msk [vmem:[#allocation2 + $0xf] sm:$0x1] %vm1229, %v1186
      %1233 = vst.msk [vmem:[#allocation2 + $0xf] sm:$0xfe] %vm1227, %v1188
      %1234 = vst.msk [vmem:[#allocation2 + $0x17] sm:$0x1] %vm1229, %v1190
      %1235 = vst.msk [vmem:[#allocation2 + $0x17] sm:$0xfe] %vm1227, %v1192
      %1236 = vst.msk [vmem:[#allocation2 + $0x1f] sm:$0x1] %vm1229, %v1194
      %1237 = vst.msk [vmem:[#allocation2 + $0x1f] sm:$0xfe] %vm1227, %v1196
      %1238 = vst.msk [vmem:[#allocation2 + $0x27] sm:$0x1] %vm1229, %v1198
      %1239 = vst.msk [vmem:[#allocation2 + $0x27] sm:$0xfe] %vm1227, %v1200
      %1240 = vst.msk [vmem:[#allocation2 + $0x2f] sm:$0x1] %vm1229, %v1202
      %1241 = vst.msk [vmem:[#allocation2 + $0x2f] sm:$0xfe] %vm1227, %v1204
      %1242 = vst.msk [vmem:[#allocation2 + $0x37] sm:$0x1] %vm1229, %v1206
      %1243 = vst.msk [vmem:[#allocation2 + $0x37] sm:$0xfe] %vm1227, %v1208
      %1244 = vst.msk [vmem:[#allocation2 + $0x3f] sm:$0x1] %vm1229, %v1210
      %1246 = vrot.lane.b32.xlu0 %v1114, 52
      %v1247 = vpop.permute.xlu0 %1246
      %1248 = vrot.lane.b32.xlu0 %v1116, 52
      %v1249 = vpop.permute.xlu0 %1248
      %1250 = vrot.lane.b32.xlu0 %v1118, 52
      %v1251 = vpop.permute.xlu0 %1250
      %1252 = vrot.lane.b32.xlu0 %v1120, 52
      %v1253 = vpop.permute.xlu0 %1252
      %1254 = vrot.lane.b32.xlu0 %v1122, 52
      %v1255 = vpop.permute.xlu0 %1254
      %1256 = vrot.lane.b32.xlu0 %v1124, 52
      %v1257 = vpop.permute.xlu0 %1256
      %1258 = vrot.lane.b32.xlu0 %v1126, 52
      %v1259 = vpop.permute.xlu0 %1258
      %1260 = vrot.lane.b32.xlu0 %v1128, 52
      %v1261 = vpop.permute.xlu0 %1260
      %vm1270 = vcmask 458144
      %1271 = vst.msk [vmem:[#allocation2] sm:$0xff] %vm1270, %v1247
      %1272 = vst.msk [vmem:[#allocation2 + $0x8] sm:$0xff] %vm1270, %v1249
      %1273 = vst.msk [vmem:[#allocation2 + $0x10] sm:$0xff] %vm1270, %v1251
      %1274 = vst.msk [vmem:[#allocation2 + $0x18] sm:$0xff] %vm1270, %v1253
      %1275 = vst.msk [vmem:[#allocation2 + $0x20] sm:$0xff] %vm1270, %v1255
      %1276 = vst.msk [vmem:[#allocation2 + $0x28] sm:$0xff] %vm1270, %v1257
      %1277 = vst.msk [vmem:[#allocation2 + $0x30] sm:$0xff] %vm1270, %v1259
      %1278 = vst.msk [vmem:[#allocation2 + $0x38] sm:$0xff] %vm1270, %v1261
      %1280 = vrot.lane.b32.xlu0 %v1114, 60
      %v1281 = vpop.permute.xlu0 %1280
      %1282 = vrot.lane.b32.xlu0 %v1115, 60
      %v1283 = vpop.permute.xlu0 %1282
      %1284 = vrot.lane.b32.xlu0 %v1116, 60
      %v1285 = vpop.permute.xlu0 %1284
      %1286 = vrot.lane.b32.xlu0 %v1117, 60
      %v1287 = vpop.permute.xlu0 %1286
      %1288 = vrot.lane.b32.xlu0 %v1118, 60
      %v1289 = vpop.permute.xlu0 %1288
      %1290 = vrot.lane.b32.xlu0 %v1119, 60
      %v1291 = vpop.permute.xlu0 %1290
      %1292 = vrot.lane.b32.xlu0 %v1120, 60
      %v1293 = vpop.permute.xlu0 %1292
      %1294 = vrot.lane.b32.xlu0 %v1121, 60
      %v1295 = vpop.permute.xlu0 %1294
      %1296 = vrot.lane.b32.xlu0 %v1122, 60
      %v1297 = vpop.permute.xlu0 %1296
      %1298 = vrot.lane.b32.xlu0 %v1123, 60
      %v1299 = vpop.permute.xlu0 %1298
      %1300 = vrot.lane.b32.xlu0 %v1124, 60
      %v1301 = vpop.permute.xlu0 %1300
      %1302 = vrot.lane.b32.xlu0 %v1125, 60
      %v1303 = vpop.permute.xlu0 %1302
      %1304 = vrot.lane.b32.xlu0 %v1126, 60
      %v1305 = vpop.permute.xlu0 %1304
      %1306 = vrot.lane.b32.xlu0 %v1127, 60
      %v1307 = vpop.permute.xlu0 %1306
      %1308 = vrot.lane.b32.xlu0 %v1128, 60
      %v1309 = vpop.permute.xlu0 %1308
      %1310 = vrot.lane.b32.xlu0 %v1129, 60
      %v1311 = vpop.permute.xlu0 %1310
      %vm1328 = vcmask 523745
      %1329 = vst.msk [vmem:[#allocation2 - $0x1] sm:$0xfe] %vm1328, %v1281
      %vm1330 = vcmask 516576
      %1331 = vst.msk [vmem:[#allocation2 + $0x7] sm:$0x1] %vm1330, %v1283
      %1332 = vst.msk [vmem:[#allocation2 + $0x7] sm:$0xfe] %vm1328, %v1285
      %1333 = vst.msk [vmem:[#allocation2 + $0xf] sm:$0x1] %vm1330, %v1287
      %1334 = vst.msk [vmem:[#allocation2 + $0xf] sm:$0xfe] %vm1328, %v1289
      %1335 = vst.msk [vmem:[#allocation2 + $0x17] sm:$0x1] %vm1330, %v1291
      %1336 = vst.msk [vmem:[#allocation2 + $0x17] sm:$0xfe] %vm1328, %v1293
      %1337 = vst.msk [vmem:[#allocation2 + $0x1f] sm:$0x1] %vm1330, %v1295
      %1338 = vst.msk [vmem:[#allocation2 + $0x1f] sm:$0xfe] %vm1328, %v1297
      %1339 = vst.msk [vmem:[#allocation2 + $0x27] sm:$0x1] %vm1330, %v1299
      %1340 = vst.msk [vmem:[#allocation2 + $0x27] sm:$0xfe] %vm1328, %v1301
      %1341 = vst.msk [vmem:[#allocation2 + $0x2f] sm:$0x1] %vm1330, %v1303
      %1342 = vst.msk [vmem:[#allocation2 + $0x2f] sm:$0xfe] %vm1328, %v1305
      %1343 = vst.msk [vmem:[#allocation2 + $0x37] sm:$0x1] %vm1330, %v1307
      %1344 = vst.msk [vmem:[#allocation2 + $0x37] sm:$0xfe] %vm1328, %v1309
      %1345 = vst.msk [vmem:[#allocation2 + $0x3f] sm:$0x1] %vm1330, %v1311
      %v1346 = vld [vmem:[#allocation2] sm:$0xff]
      %v1347 = vld [vmem:[#allocation2 + $0x8] sm:$0xff]
      %v1348 = vld [vmem:[#allocation2 + $0x10] sm:$0xff]
      %v1349 = vld [vmem:[#allocation2 + $0x18] sm:$0xff]
      %v1350 = vld [vmem:[#allocation2 + $0x20] sm:$0xff]
      %v1351 = vld [vmem:[#allocation2 + $0x28] sm:$0xff]
      %v1352 = vld [vmem:[#allocation2 + $0x30] sm:$0xff]
      %v1353 = vld [vmem:[#allocation2 + $0x38] sm:$0xff]
      %v1354 = vpack.c.bf16 %v1347, %v1346
      %v1355 = vpack.c.bf16 %v1349, %v1348
      %v1356 = vpack.c.bf16 %v1351, %v1350
      %v1357 = vpack.c.bf16 %v1353, %v1352
      %v1358 = vld [vmem:[%s1] sm:$0xf]
      %v1359 = vld [vmem:[%s1 + $0x4] sm:$0xf]
      %v1360 = vld [vmem:[%s1 + $0x8] sm:$0xf]
      %v1361 = vld [vmem:[%s1 + $0xc] sm:$0xf]
      %v1362 = vld [vmem:[%s1 + $0x10] sm:$0xf]
      %v1363 = vld [vmem:[%s1 + $0x14] sm:$0xf]
      %v1364 = vld [vmem:[%s1 + $0x18] sm:$0xf]
      %v1365 = vld [vmem:[%s1 + $0x1c] sm:$0xf]
      %v1374 = vunpack.c.l.b16 %v1358
      %v1375 = vunpack.c.l.b16 %v1359
      %v1376 = vunpack.c.l.b16 %v1360
      %v1377 = vunpack.c.l.b16 %v1361
      %v1378 = vunpack.c.l.b16 %v1362
      %v1379 = vunpack.c.l.b16 %v1363
      %v1380 = vunpack.c.l.b16 %v1364
      %v1381 = vunpack.c.l.b16 %v1365
      %v1382 = vpack.c.b16 %v1375, %v1374
      %v1383 = vpack.c.b16 %v1377, %v1376
      %v1384 = vpack.c.b16 %v1379, %v1378
      %v1385 = vpack.c.b16 %v1381, %v1380
      %vm1390 = vcmask 523264
      %v1392 = vsel %vm1390, %v1354, 0
      %v1395 = vsel %vm1390, %v1355, 0
      %v1398 = vsel %vm1390, %v1356, 0
      %v1401 = vsel %vm1390, %v1357, 0
      %1403 = vmatprep.subr.bf16.mxu0 0
      %1404 = vmatpush1.bf16.msra.mxu0 %v1382
      %1405 = vmatprep.subr.bf16.mxu0 0
      %1406 = vmatpush1.bf16.msra.mxu0 %v1383
      %1407 = vmatprep.subr.bf16.mxu0 0
      %1408 = vmatpush1.bf16.msra.mxu0 %v1384
      %1409 = vmatprep.subr.bf16.mxu0 0
      %1410 = vmatpush1.bf16.msra.mxu0 %v1385
      %1411 = vmatprep.subr.bf16.mxu0 0
      %1412 = vmatpush1.bf16.msra.mxu0 0
      %1413 = vmatprep.subr.bf16.mxu0 0
      %1414 = vmatpush1.bf16.msra.mxu0 0
      %1415 = vmatprep.subr.bf16.mxu0 0
      %1416 = vmatpush1.bf16.msra.mxu0 0
      %1417 = vmatprep.subr.bf16.mxu0 0
      %1418 = vmatpush1.bf16.msra.mxu0 0
      %1419 = vmatprep.subr.bf16.mxu0 0
      %1420 = vmatpush1.bf16.msra.mxu0 0
      %1421 = vmatprep.subr.bf16.mxu0 0
      %1422 = vmatpush1.bf16.msra.mxu0 0
      %1423 = vmatprep.subr.bf16.mxu0 0
      %1424 = vmatpush1.bf16.msra.mxu0 0
      %1425 = vmatprep.subr.bf16.mxu0 0
      %1426 = vmatpush1.bf16.msra.mxu0 0
      %1427 = vmatprep.subr.bf16.mxu0 0
      %1428 = vmatpush1.bf16.msra.mxu0 0
      %1429 = vmatprep.subr.bf16.mxu0 0
      %1430 = vmatpush1.bf16.msra.mxu0 0
      %1431 = vmatprep.subr.bf16.mxu0 0
      %1432 = vmatpush1.bf16.msra.mxu0 0
      %1433 = vmatprep.subr.bf16.mxu0 0
      %1434 = vmatpush1.bf16.msra.mxu0 0
      %1435 = vmatprep.mubr.bf16.mxu0 0
      %1436 = vmatmul.mubr.bf16.gmra.mrb[0].mxu0 %v1392
      %v1437 = vpop.f32.mrb[0].mxu0
      %v1438 = vadd.f32 0.0, %v1437
      %v1439 = vpop.f32.mrb[0].mxu0
      %v1440 = vpop.f32.mrb[0].mxu0
      %v1441 = vadd.f32 0.0, %v1440
      %v1442 = vpop.f32.mrb[0].mxu0
      %1443 = vmatprep.mubr.bf16.mxu0 0
      %1444 = vmatmul.mubr.bf16.gmra.mrb[0].mxu0 %v1395
      %v1445 = vpop.f32.mrb[0].mxu0
      %v1446 = vadd.f32 0.0, %v1445
      %v1447 = vpop.f32.mrb[0].mxu0
      %v1448 = vpop.f32.mrb[0].mxu0
      %v1449 = vadd.f32 0.0, %v1448
      %v1450 = vpop.f32.mrb[0].mxu0
      %1451 = vmatprep.mubr.bf16.mxu0 0
      %1452 = vmatmul.mubr.bf16.gmra.mrb[0].mxu0 %v1398
      %v1453 = vpop.f32.mrb[0].mxu0
      %v1454 = vadd.f32 0.0, %v1453
      %v1455 = vpop.f32.mrb[0].mxu0
      %v1456 = vpop.f32.mrb[0].mxu0
      %v1457 = vadd.f32 0.0, %v1456
      %v1458 = vpop.f32.mrb[0].mxu0
      %1459 = vmatprep.mubr.bf16.mxu0 0
      %1460 = vmatmul.mubr.bf16.gmra.mrb[0].mxu0 %v1401
      %v1461 = vpop.f32.mrb[0].mxu0
      %v1462 = vadd.f32 0.0, %v1461
      %v1463 = vpop.f32.mrb[0].mxu0
      %v1464 = vpop.f32.mrb[0].mxu0
      %v1465 = vadd.f32 0.0, %v1464
      %v1466 = vpop.f32.mrb[0].mxu0
      %1467 = vdwg.mxu0
      %vm1468 = vcmask 64512
      %1469 = vst.msk [vmem:[#allocation3] sm:$0xff] %vm1468, 0.0
      %vm1470 = vcmask 58368
      %1471 = vst.msk [vmem:[#allocation3 + $0x8] sm:$0x3] %vm1470, 0.0
      %1472 = vst.msk [vmem:[#allocation3 + $0x10] sm:$0xff] %vm1468, 0.0
      %1473 = vst.msk [vmem:[#allocation3 + $0x18] sm:$0x3] %vm1470, 0.0
      %1474 = vst.msk [vmem:[#allocation3 + $0x20] sm:$0xff] %vm1468, 0.0
      %1475 = vst.msk [vmem:[#allocation3 + $0x28] sm:$0x3] %vm1470, 0.0
      %1476 = vst.msk [vmem:[#allocation3 + $0x30] sm:$0xff] %vm1468, 0.0
      %1477 = vst.msk [vmem:[#allocation3 + $0x38] sm:$0x3] %vm1470, 0.0
      %1478 = vst.msk [vmem:[#allocation3 + $0x40] sm:$0xff] %vm1468, 0.0
      %1479 = vst.msk [vmem:[#allocation3 + $0x48] sm:$0x3] %vm1470, 0.0
      %1480 = vst.msk [vmem:[#allocation3 + $0x50] sm:$0xff] %vm1468, 0.0
      %1481 = vst.msk [vmem:[#allocation3 + $0x58] sm:$0x3] %vm1470, 0.0
      %1482 = vst.msk [vmem:[#allocation3 + $0x60] sm:$0xff] %vm1468, 0.0
      %1483 = vst.msk [vmem:[#allocation3 + $0x68] sm:$0x3] %vm1470, 0.0
      %1484 = vst.msk [vmem:[#allocation3 + $0x70] sm:$0xff] %vm1468, 0.0
      %1485 = vst.msk [vmem:[#allocation3 + $0x78] sm:$0x3] %vm1470, 0.0
      %1486 = vst.msk [vmem:[#allocation3 + $0x80] sm:$0xff] %vm1468, 0.0
      %1487 = vst.msk [vmem:[#allocation3 + $0x88] sm:$0x3] %vm1470, 0.0
      %1488 = vst.msk [vmem:[#allocation3 + $0x90] sm:$0xff] %vm1468, 0.0
      %1489 = vst.msk [vmem:[#allocation3 + $0x98] sm:$0x3] %vm1470, 0.0
      %v1490 = vmax.f32 %v1438, 0.0
      %v1491 = vmax.f32 %v1441, 0.0
      %v1492 = vmax.f32 %v1446, 0.0
      %v1493 = vmax.f32 %v1449, 0.0
      %v1494 = vmax.f32 %v1454, 0.0
      %v1495 = vmax.f32 %v1457, 0.0
      %v1496 = vmax.f32 %v1462, 0.0
      %v1497 = vmax.f32 %v1465, 0.0
      %s1498 = scalar_lea.vmem [#allocation3], 16
      %1499 = vst.msk [vmem:[%s1498 + $0x1] sm:$0xff] %vm1468, %v1490
      %1500 = vst.msk [vmem:[%s1498 + $0x11] sm:$0xff] %vm1468, %v1491
      %1501 = vst.msk [vmem:[%s1498 + $0x21] sm:$0xff] %vm1468, %v1492
      %1502 = vst.msk [vmem:[%s1498 + $0x31] sm:$0xff] %vm1468, %v1493
      %1503 = vst.msk [vmem:[%s1498 + $0x41] sm:$0xff] %vm1468, %v1494
      %1504 = vst.msk [vmem:[%s1498 + $0x51] sm:$0xff] %vm1468, %v1495
      %1505 = vst.msk [vmem:[%s1498 + $0x61] sm:$0xff] %vm1468, %v1496
      %1506 = vst.msk [vmem:[%s1498 + $0x71] sm:$0xff] %vm1468, %v1497
      %v1507 = vld [vmem:[#allocation3] sm:$0xff]
      %v1508 = vld [vmem:[#allocation3 + $0x10] sm:$0xff]
      %v1509 = vld [vmem:[#allocation3 + $0x20] sm:$0xff]
      %v1510 = vld [vmem:[#allocation3 + $0x30] sm:$0xff]
      %v1511 = vld [vmem:[#allocation3 + $0x40] sm:$0xff]
      %v1512 = vld [vmem:[#allocation3 + $0x50] sm:$0xff]
      %v1513 = vld [vmem:[#allocation3 + $0x60] sm:$0xff]
      %v1514 = vld [vmem:[#allocation3 + $0x70] sm:$0xff]
      %1515 = vst.msk [vmem:[#allocation4] sm:$0xff] %vm1468, %v1507
      %1516 = vst.msk [vmem:[#allocation4 + $0x8] sm:$0xff] %vm1468, %v1508
      %1517 = vst.msk [vmem:[#allocation4 + $0x10] sm:$0xff] %vm1468, %v1509
      %1518 = vst.msk [vmem:[#allocation4 + $0x18] sm:$0xff] %vm1468, %v1510
      %1519 = vst.msk [vmem:[#allocation4 + $0x20] sm:$0xff] %vm1468, %v1511
      %1520 = vst.msk [vmem:[#allocation4 + $0x28] sm:$0xff] %vm1468, %v1512
      %1521 = vst.msk [vmem:[#allocation4 + $0x30] sm:$0xff] %vm1468, %v1513
      %1522 = vst.msk [vmem:[#allocation4 + $0x38] sm:$0xff] %vm1468, %v1514
      %v1523 = vld [vmem:[#allocation3 + $0x1] sm:$0xff]
      %v1524 = vld [vmem:[#allocation3 + $0x11] sm:$0xff]
      %v1525 = vld [vmem:[#allocation3 + $0x21] sm:$0xff]
      %v1526 = vld [vmem:[#allocation3 + $0x31] sm:$0xff]
      %v1527 = vld [vmem:[#allocation3 + $0x41] sm:$0xff]
      %v1528 = vld [vmem:[#allocation3 + $0x51] sm:$0xff]
      %v1529 = vld [vmem:[#allocation3 + $0x61] sm:$0xff]
      %v1530 = vld [vmem:[#allocation3 + $0x71] sm:$0xff]
      %1539 = vrot.lane.b32.xlu0 %v1523, 8
      %v1540 = vpop.permute.xlu0 %1539
      %1541 = vrot.lane.b32.xlu0 %v1524, 8
      %v1542 = vpop.permute.xlu0 %1541
      %1543 = vrot.lane.b32.xlu0 %v1525, 8
      %v1544 = vpop.permute.xlu0 %1543
      %1545 = vrot.lane.b32.xlu0 %v1526, 8
      %v1546 = vpop.permute.xlu0 %1545
      %1547 = vrot.lane.b32.xlu0 %v1527, 8
      %v1548 = vpop.permute.xlu0 %1547
      %1549 = vrot.lane.b32.xlu0 %v1528, 8
      %v1550 = vpop.permute.xlu0 %1549
      %1551 = vrot.lane.b32.xlu0 %v1529, 8
      %v1552 = vpop.permute.xlu0 %1551
      %1553 = vrot.lane.b32.xlu0 %v1530, 8
      %v1554 = vpop.permute.xlu0 %1553
      %vm1563 = vcmask 130112
      %1564 = vst.msk [vmem:[#allocation4] sm:$0xff] %vm1563, %v1540
      %1565 = vst.msk [vmem:[#allocation4 + $0x8] sm:$0xff] %vm1563, %v1542
      %1566 = vst.msk [vmem:[#allocation4 + $0x10] sm:$0xff] %vm1563, %v1544
      %1567 = vst.msk [vmem:[#allocation4 + $0x18] sm:$0xff] %vm1563, %v1546
      %1568 = vst.msk [vmem:[#allocation4 + $0x20] sm:$0xff] %vm1563, %v1548
      %1569 = vst.msk [vmem:[#allocation4 + $0x28] sm:$0xff] %vm1563, %v1550
      %1570 = vst.msk [vmem:[#allocation4 + $0x30] sm:$0xff] %vm1563, %v1552
      %1571 = vst.msk [vmem:[#allocation4 + $0x38] sm:$0xff] %vm1563, %v1554
      %v1572 = vld [vmem:[#allocation3 + $0x2] sm:$0xff]
      %v1573 = vld [vmem:[#allocation3 + $0x12] sm:$0xff]
      %v1574 = vld [vmem:[#allocation3 + $0x22] sm:$0xff]
      %v1575 = vld [vmem:[#allocation3 + $0x32] sm:$0xff]
      %v1576 = vld [vmem:[#allocation3 + $0x42] sm:$0xff]
      %v1577 = vld [vmem:[#allocation3 + $0x52] sm:$0xff]
      %v1578 = vld [vmem:[#allocation3 + $0x62] sm:$0xff]
      %v1579 = vld [vmem:[#allocation3 + $0x72] sm:$0xff]
      %1588 = vrot.lane.b32.xlu0 %v1572, 16
      %v1589 = vpop.permute.xlu0 %1588
      %1590 = vrot.lane.b32.xlu0 %v1573, 16
      %v1591 = vpop.permute.xlu0 %1590
      %1592 = vrot.lane.b32.xlu0 %v1574, 16
      %v1593 = vpop.permute.xlu0 %1592
      %1594 = vrot.lane.b32.xlu0 %v1575, 16
      %v1595 = vpop.permute.xlu0 %1594
      %1596 = vrot.lane.b32.xlu0 %v1576, 16
      %v1597 = vpop.permute.xlu0 %1596
      %1598 = vrot.lane.b32.xlu0 %v1577, 16
      %v1599 = vpop.permute.xlu0 %1598
      %1600 = vrot.lane.b32.xlu0 %v1578, 16
      %v1601 = vpop.permute.xlu0 %1600
      %1602 = vrot.lane.b32.xlu0 %v1579, 16
      %v1603 = vpop.permute.xlu0 %1602
      %vm1612 = vcmask 195712
      %1613 = vst.msk [vmem:[#allocation4] sm:$0xff] %vm1612, %v1589
      %1614 = vst.msk [vmem:[#allocation4 + $0x8] sm:$0xff] %vm1612, %v1591
      %1615 = vst.msk [vmem:[#allocation4 + $0x10] sm:$0xff] %vm1612, %v1593
      %1616 = vst.msk [vmem:[#allocation4 + $0x18] sm:$0xff] %vm1612, %v1595
      %1617 = vst.msk [vmem:[#allocation4 + $0x20] sm:$0xff] %vm1612, %v1597
      %1618 = vst.msk [vmem:[#allocation4 + $0x28] sm:$0xff] %vm1612, %v1599
      %1619 = vst.msk [vmem:[#allocation4 + $0x30] sm:$0xff] %vm1612, %v1601
      %1620 = vst.msk [vmem:[#allocation4 + $0x38] sm:$0xff] %vm1612, %v1603
      %v1621 = vld [vmem:[%s1498] sm:$0xff]
      %v1622 = vld [vmem:[%s1498 + $0x10] sm:$0xff]
      %v1623 = vld [vmem:[%s1498 + $0x20] sm:$0xff]
      %v1624 = vld [vmem:[%s1498 + $0x30] sm:$0xff]
      %v1625 = vld [vmem:[%s1498 + $0x40] sm:$0xff]
      %v1626 = vld [vmem:[%s1498 + $0x50] sm:$0xff]
      %v1627 = vld [vmem:[%s1498 + $0x60] sm:$0xff]
      %v1628 = vld [vmem:[%s1498 + $0x70] sm:$0xff]
      %1637 = vrot.lane.b32.xlu0 %v1621, 24
      %v1638 = vpop.permute.xlu0 %1637
      %1639 = vrot.lane.b32.xlu0 %v1622, 24
      %v1640 = vpop.permute.xlu0 %1639
      %1641 = vrot.lane.b32.xlu0 %v1623, 24
      %v1642 = vpop.permute.xlu0 %1641
      %1643 = vrot.lane.b32.xlu0 %v1624, 24
      %v1644 = vpop.permute.xlu0 %1643
      %1645 = vrot.lane.b32.xlu0 %v1625, 24
      %v1646 = vpop.permute.xlu0 %1645
      %1647 = vrot.lane.b32.xlu0 %v1626, 24
      %v1648 = vpop.permute.xlu0 %1647
      %1649 = vrot.lane.b32.xlu0 %v1627, 24
      %v1650 = vpop.permute.xlu0 %1649
      %1651 = vrot.lane.b32.xlu0 %v1628, 24
      %v1652 = vpop.permute.xlu0 %1651
      %vm1661 = vcmask 261312
      %1662 = vst.msk [vmem:[#allocation4] sm:$0xff] %vm1661, %v1638
      %1663 = vst.msk [vmem:[#allocation4 + $0x8] sm:$0xff] %vm1661, %v1640
      %1664 = vst.msk [vmem:[#allocation4 + $0x10] sm:$0xff] %vm1661, %v1642
      %1665 = vst.msk [vmem:[#allocation4 + $0x18] sm:$0xff] %vm1661, %v1644
      %1666 = vst.msk [vmem:[#allocation4 + $0x20] sm:$0xff] %vm1661, %v1646
      %1667 = vst.msk [vmem:[#allocation4 + $0x28] sm:$0xff] %vm1661, %v1648
      %1668 = vst.msk [vmem:[#allocation4 + $0x30] sm:$0xff] %vm1661, %v1650
      %1669 = vst.msk [vmem:[#allocation4 + $0x38] sm:$0xff] %vm1661, %v1652
      %v1670 = vld [vmem:[%s1498 + $0x1] sm:$0xff]
      %v1671 = vld [vmem:[%s1498 + $0x11] sm:$0xff]
      %v1672 = vld [vmem:[%s1498 + $0x21] sm:$0xff]
      %v1673 = vld [vmem:[%s1498 + $0x31] sm:$0xff]
      %v1674 = vld [vmem:[%s1498 + $0x41] sm:$0xff]
      %v1675 = vld [vmem:[%s1498 + $0x51] sm:$0xff]
      %v1676 = vld [vmem:[%s1498 + $0x61] sm:$0xff]
      %v1677 = vld [vmem:[%s1498 + $0x71] sm:$0xff]
      %1686 = vrot.lane.b32.xlu0 %v1670, 32
      %v1687 = vpop.permute.xlu0 %1686
      %1688 = vrot.lane.b32.xlu0 %v1671, 32
      %v1689 = vpop.permute.xlu0 %1688
      %1690 = vrot.lane.b32.xlu0 %v1672, 32
      %v1691 = vpop.permute.xlu0 %1690
      %1692 = vrot.lane.b32.xlu0 %v1673, 32
      %v1693 = vpop.permute.xlu0 %1692
      %1694 = vrot.lane.b32.xlu0 %v1674, 32
      %v1695 = vpop.permute.xlu0 %1694
      %1696 = vrot.lane.b32.xlu0 %v1675, 32
      %v1697 = vpop.permute.xlu0 %1696
      %1698 = vrot.lane.b32.xlu0 %v1676, 32
      %v1699 = vpop.permute.xlu0 %1698
      %1700 = vrot.lane.b32.xlu0 %v1677, 32
      %v1701 = vpop.permute.xlu0 %1700
      %vm1710 = vcmask 326912
      %1711 = vst.msk [vmem:[#allocation4] sm:$0xff] %vm1710, %v1687
      %1712 = vst.msk [vmem:[#allocation4 + $0x8] sm:$0xff] %vm1710, %v1689
      %1713 = vst.msk [vmem:[#allocation4 + $0x10] sm:$0xff] %vm1710, %v1691
      %1714 = vst.msk [vmem:[#allocation4 + $0x18] sm:$0xff] %vm1710, %v1693
      %1715 = vst.msk [vmem:[#allocation4 + $0x20] sm:$0xff] %vm1710, %v1695
      %1716 = vst.msk [vmem:[#allocation4 + $0x28] sm:$0xff] %vm1710, %v1697
      %1717 = vst.msk [vmem:[#allocation4 + $0x30] sm:$0xff] %vm1710, %v1699
      %1718 = vst.msk [vmem:[#allocation4 + $0x38] sm:$0xff] %vm1710, %v1701
      %v1719 = vld [vmem:[%s1498 + $0x2] sm:$0xff]
      %v1720 = vld [vmem:[%s1498 + $0x12] sm:$0xff]
      %v1721 = vld [vmem:[%s1498 + $0x22] sm:$0xff]
      %v1722 = vld [vmem:[%s1498 + $0x32] sm:$0xff]
      %v1723 = vld [vmem:[%s1498 + $0x42] sm:$0xff]
      %v1724 = vld [vmem:[%s1498 + $0x52] sm:$0xff]
      %v1725 = vld [vmem:[%s1498 + $0x62] sm:$0xff]
      %v1726 = vld [vmem:[%s1498 + $0x72] sm:$0xff]
      %1735 = vrot.lane.b32.xlu0 %v1719, 40
      %v1736 = vpop.permute.xlu0 %1735
      %1737 = vrot.lane.b32.xlu0 %v1720, 40
      %v1738 = vpop.permute.xlu0 %1737
      %1739 = vrot.lane.b32.xlu0 %v1721, 40
      %v1740 = vpop.permute.xlu0 %1739
      %1741 = vrot.lane.b32.xlu0 %v1722, 40
      %v1742 = vpop.permute.xlu0 %1741
      %1743 = vrot.lane.b32.xlu0 %v1723, 40
      %v1744 = vpop.permute.xlu0 %1743
      %1745 = vrot.lane.b32.xlu0 %v1724, 40
      %v1746 = vpop.permute.xlu0 %1745
      %1747 = vrot.lane.b32.xlu0 %v1725, 40
      %v1748 = vpop.permute.xlu0 %1747
      %1749 = vrot.lane.b32.xlu0 %v1726, 40
      %v1750 = vpop.permute.xlu0 %1749
      %vm1759 = vcmask 392512
      %1760 = vst.msk [vmem:[#allocation4] sm:$0xff] %vm1759, %v1736
      %1761 = vst.msk [vmem:[#allocation4 + $0x8] sm:$0xff] %vm1759, %v1738
      %1762 = vst.msk [vmem:[#allocation4 + $0x10] sm:$0xff] %vm1759, %v1740
      %1763 = vst.msk [vmem:[#allocation4 + $0x18] sm:$0xff] %vm1759, %v1742
      %1764 = vst.msk [vmem:[#allocation4 + $0x20] sm:$0xff] %vm1759, %v1744
      %1765 = vst.msk [vmem:[#allocation4 + $0x28] sm:$0xff] %vm1759, %v1746
      %1766 = vst.msk [vmem:[#allocation4 + $0x30] sm:$0xff] %vm1759, %v1748
      %1767 = vst.msk [vmem:[#allocation4 + $0x38] sm:$0xff] %vm1759, %v1750
      %s1768 = scalar_lea.vmem [#allocation3], 32
      %v1769 = vld [vmem:[%s1768] sm:$0xff]
      %v1770 = vld [vmem:[%s1768 + $0x10] sm:$0xff]
      %v1771 = vld [vmem:[%s1768 + $0x20] sm:$0xff]
      %v1772 = vld [vmem:[%s1768 + $0x30] sm:$0xff]
      %v1773 = vld [vmem:[%s1768 + $0x40] sm:$0xff]
      %v1774 = vld [vmem:[%s1768 + $0x50] sm:$0xff]
      %v1775 = vld [vmem:[%s1768 + $0x60] sm:$0xff]
      %v1776 = vld [vmem:[%s1768 + $0x70] sm:$0xff]
      %1785 = vrot.lane.b32.xlu0 %v1769, 48
      %v1786 = vpop.permute.xlu0 %1785
      %1787 = vrot.lane.b32.xlu0 %v1770, 48
      %v1788 = vpop.permute.xlu0 %1787
      %1789 = vrot.lane.b32.xlu0 %v1771, 48
      %v1790 = vpop.permute.xlu0 %1789
      %1791 = vrot.lane.b32.xlu0 %v1772, 48
      %v1792 = vpop.permute.xlu0 %1791
      %1793 = vrot.lane.b32.xlu0 %v1773, 48
      %v1794 = vpop.permute.xlu0 %1793
      %1795 = vrot.lane.b32.xlu0 %v1774, 48
      %v1796 = vpop.permute.xlu0 %1795
      %1797 = vrot.lane.b32.xlu0 %v1775, 48
      %v1798 = vpop.permute.xlu0 %1797
      %1799 = vrot.lane.b32.xlu0 %v1776, 48
      %v1800 = vpop.permute.xlu0 %1799
      %vm1809 = vcmask 458112
      %1810 = vst.msk [vmem:[#allocation4] sm:$0xff] %vm1809, %v1786
      %1811 = vst.msk [vmem:[#allocation4 + $0x8] sm:$0xff] %vm1809, %v1788
      %1812 = vst.msk [vmem:[#allocation4 + $0x10] sm:$0xff] %vm1809, %v1790
      %1813 = vst.msk [vmem:[#allocation4 + $0x18] sm:$0xff] %vm1809, %v1792
      %1814 = vst.msk [vmem:[#allocation4 + $0x20] sm:$0xff] %vm1809, %v1794
      %1815 = vst.msk [vmem:[#allocation4 + $0x28] sm:$0xff] %vm1809, %v1796
      %1816 = vst.msk [vmem:[#allocation4 + $0x30] sm:$0xff] %vm1809, %v1798
      %1817 = vst.msk [vmem:[#allocation4 + $0x38] sm:$0xff] %vm1809, %v1800
      %v1818 = vld [vmem:[%s1768 + $0x1] sm:$0xff]
      %v1819 = vld [vmem:[%s1768 + $0x11] sm:$0xff]
      %v1820 = vld [vmem:[%s1768 + $0x21] sm:$0xff]
      %v1821 = vld [vmem:[%s1768 + $0x31] sm:$0xff]
      %v1822 = vld [vmem:[%s1768 + $0x41] sm:$0xff]
      %v1823 = vld [vmem:[%s1768 + $0x51] sm:$0xff]
      %v1824 = vld [vmem:[%s1768 + $0x61] sm:$0xff]
      %v1825 = vld [vmem:[%s1768 + $0x71] sm:$0xff]
      %1834 = vrot.lane.b32.xlu0 %v1818, 56
      %v1835 = vpop.permute.xlu0 %1834
      %1836 = vrot.lane.b32.xlu0 %v1819, 56
      %v1837 = vpop.permute.xlu0 %1836
      %1838 = vrot.lane.b32.xlu0 %v1820, 56
      %v1839 = vpop.permute.xlu0 %1838
      %1840 = vrot.lane.b32.xlu0 %v1821, 56
      %v1841 = vpop.permute.xlu0 %1840
      %1842 = vrot.lane.b32.xlu0 %v1822, 56
      %v1843 = vpop.permute.xlu0 %1842
      %1844 = vrot.lane.b32.xlu0 %v1823, 56
      %v1845 = vpop.permute.xlu0 %1844
      %1846 = vrot.lane.b32.xlu0 %v1824, 56
      %v1847 = vpop.permute.xlu0 %1846
      %1848 = vrot.lane.b32.xlu0 %v1825, 56
      %v1849 = vpop.permute.xlu0 %1848
      %vm1858 = vcmask 523712
      %1859 = vst.msk [vmem:[#allocation4] sm:$0xff] %vm1858, %v1835
      %1860 = vst.msk [vmem:[#allocation4 + $0x8] sm:$0xff] %vm1858, %v1837
      %1861 = vst.msk [vmem:[#allocation4 + $0x10] sm:$0xff] %vm1858, %v1839
      %1862 = vst.msk [vmem:[#allocation4 + $0x18] sm:$0xff] %vm1858, %v1841
      %1863 = vst.msk [vmem:[#allocation4 + $0x20] sm:$0xff] %vm1858, %v1843
      %1864 = vst.msk [vmem:[#allocation4 + $0x28] sm:$0xff] %vm1858, %v1845
      %1865 = vst.msk [vmem:[#allocation4 + $0x30] sm:$0xff] %vm1858, %v1847
      %1866 = vst.msk [vmem:[#allocation4 + $0x38] sm:$0xff] %vm1858, %v1849
      %v1867 = vld [vmem:[%s1768 + $0x2] sm:$0xff]
      %v1868 = vld [vmem:[%s1768 + $0x12] sm:$0xff]
      %v1869 = vld [vmem:[%s1768 + $0x22] sm:$0xff]
      %v1870 = vld [vmem:[%s1768 + $0x32] sm:$0xff]
      %v1871 = vld [vmem:[%s1768 + $0x42] sm:$0xff]
      %v1872 = vld [vmem:[%s1768 + $0x52] sm:$0xff]
      %v1873 = vld [vmem:[%s1768 + $0x62] sm:$0xff]
      %v1874 = vld [vmem:[%s1768 + $0x72] sm:$0xff]
      %1883 = vrot.lane.b32.xlu0 %v1867, 64
      %v1884 = vpop.permute.xlu0 %1883
      %1885 = vrot.lane.b32.xlu0 %v1868, 64
      %v1886 = vpop.permute.xlu0 %1885
      %1887 = vrot.lane.b32.xlu0 %v1869, 64
      %v1888 = vpop.permute.xlu0 %1887
      %1889 = vrot.lane.b32.xlu0 %v1870, 64
      %v1890 = vpop.permute.xlu0 %1889
      %1891 = vrot.lane.b32.xlu0 %v1871, 64
      %v1892 = vpop.permute.xlu0 %1891
      %1893 = vrot.lane.b32.xlu0 %v1872, 64
      %v1894 = vpop.permute.xlu0 %1893
      %1895 = vrot.lane.b32.xlu0 %v1873, 64
      %v1896 = vpop.permute.xlu0 %1895
      %1897 = vrot.lane.b32.xlu0 %v1874, 64
      %v1898 = vpop.permute.xlu0 %1897
      %vm1907 = vcmask 589312
      %1908 = vst.msk [vmem:[#allocation4] sm:$0xff] %vm1907, %v1884
      %1909 = vst.msk [vmem:[#allocation4 + $0x8] sm:$0xff] %vm1907, %v1886
      %1910 = vst.msk [vmem:[#allocation4 + $0x10] sm:$0xff] %vm1907, %v1888
      %1911 = vst.msk [vmem:[#allocation4 + $0x18] sm:$0xff] %vm1907, %v1890
      %1912 = vst.msk [vmem:[#allocation4 + $0x20] sm:$0xff] %vm1907, %v1892
      %1913 = vst.msk [vmem:[#allocation4 + $0x28] sm:$0xff] %vm1907, %v1894
      %1914 = vst.msk [vmem:[#allocation4 + $0x30] sm:$0xff] %vm1907, %v1896
      %1915 = vst.msk [vmem:[#allocation4 + $0x38] sm:$0xff] %vm1907, %v1898
      %v1916 = vld [vmem:[#allocation4] sm:$0xff]
      %v1917 = vld [vmem:[#allocation4 + $0x8] sm:$0xff]
      %v1918 = vld [vmem:[#allocation4 + $0x10] sm:$0xff]
      %v1919 = vld [vmem:[#allocation4 + $0x18] sm:$0xff]
      %v1920 = vld [vmem:[#allocation4 + $0x20] sm:$0xff]
      %v1921 = vld [vmem:[#allocation4 + $0x28] sm:$0xff]
      %v1922 = vld [vmem:[#allocation4 + $0x30] sm:$0xff]
      %v1923 = vld [vmem:[#allocation4 + $0x38] sm:$0xff]
      %v1924 = vpack.c.bf16 %v1917, %v1916
      %v1925 = vpack.c.bf16 %v1919, %v1918
      %v1926 = vpack.c.bf16 %v1921, %v1920
      %v1927 = vpack.c.bf16 %v1923, %v1922
      %v1928 = vld [vmem:[%s2] sm:$0xf]
      %v1929 = vld [vmem:[%s2 + $0x4] sm:$0xf]
      %v1930 = vld [vmem:[%s2 + $0x8] sm:$0xf]
      %v1931 = vld [vmem:[%s2 + $0xc] sm:$0xf]
      %v1932 = vld [vmem:[%s2 + $0x10] sm:$0xf]
      %v1933 = vld [vmem:[%s2 + $0x14] sm:$0xf]
      %v1934 = vld [vmem:[%s2 + $0x18] sm:$0xf]
      %v1935 = vld [vmem:[%s2 + $0x1c] sm:$0xf]
      %v1936 = vld [vmem:[%s2 + $0x20] sm:$0xf]
      %v1946 = vunpack.c.l.b16 %v1928
      %v1947 = vunpack.c.l.b16 %v1929
      %v1948 = vunpack.c.l.b16 %v1930
      %v1949 = vunpack.c.l.b16 %v1931
      %v1950 = vunpack.c.l.b16 %v1932
      %v1951 = vunpack.c.l.b16 %v1933
      %v1952 = vunpack.c.l.b16 %v1934
      %v1953 = vunpack.c.l.b16 %v1935
      %v1954 = vunpack.c.l.b16 %v1936
      %v1955 = vpack.c.b16 %v1947, %v1946
      %v1956 = vpack.c.b16 %v1949, %v1948
      %v1957 = vpack.c.b16 %v1951, %v1950
      %v1958 = vpack.c.b16 %v1953, %v1952
      %v1959 = vpack.c.b16 %v1954, %v1954
      %vm1964 = vcmask 588800
      %v1966 = vsel %vm1964, %v1924, 0
      %v1969 = vsel %vm1964, %v1925, 0
      %v1972 = vsel %vm1964, %v1926, 0
      %v1975 = vsel %vm1964, %v1927, 0
      %vm1977 = vcmask 1043456
      %v1979 = vsel %vm1977, %v1959, 0
      %1981 = vmatprep.subr.bf16.mxu0 0
      %1982 = vmatpush1.bf16.msra.mxu0 %v1955
      %1983 = vmatprep.subr.bf16.mxu0 0
      %1984 = vmatpush1.bf16.msra.mxu0 %v1956
      %1985 = vmatprep.subr.bf16.mxu0 0
      %1986 = vmatpush1.bf16.msra.mxu0 %v1957
      %1987 = vmatprep.subr.bf16.mxu0 0
      %1988 = vmatpush1.bf16.msra.mxu0 %v1958
      %1989 = vmatprep.subr.bf16.mxu0 0
      %1990 = vmatpush1.bf16.msra.mxu0 %v1979
      %1991 = vmatprep.subr.bf16.mxu0 0
      %1992 = vmatpush1.bf16.msra.mxu0 0
      %1993 = vmatprep.subr.bf16.mxu0 0
      %1994 = vmatpush1.bf16.msra.mxu0 0
      %1995 = vmatprep.subr.bf16.mxu0 0
      %1996 = vmatpush1.bf16.msra.mxu0 0
      %1997 = vmatprep.subr.bf16.mxu0 0
      %1998 = vmatpush1.bf16.msra.mxu0 0
      %1999 = vmatprep.subr.bf16.mxu0 0
      %2000 = vmatpush1.bf16.msra.mxu0 0
      %2001 = vmatprep.subr.bf16.mxu0 0
      %2002 = vmatpush1.bf16.msra.mxu0 0
      %2003 = vmatprep.subr.bf16.mxu0 0
      %2004 = vmatpush1.bf16.msra.mxu0 0
      %2005 = vmatprep.subr.bf16.mxu0 0
      %2006 = vmatpush1.bf16.msra.mxu0 0
      %2007 = vmatprep.subr.bf16.mxu0 0
      %2008 = vmatpush1.bf16.msra.mxu0 0
      %2009 = vmatprep.subr.bf16.mxu0 0
      %2010 = vmatpush1.bf16.msra.mxu0 0
      %2011 = vmatprep.subr.bf16.mxu0 0
      %2012 = vmatpush1.bf16.msra.mxu0 0
      %2013 = vmatprep.mubr.bf16.mxu0 0
      %2014 = vmatmul.mubr.bf16.gmra.mrb[0].mxu0 %v1966
      %v2015 = vpop.f32.mrb[0].mxu0
      %v2016 = vadd.f32 0.0, %v2015
      %v2017 = vpop.f32.mrb[0].mxu0
      %v2018 = vpop.f32.mrb[0].mxu0
      %v2019 = vadd.f32 0.0, %v2018
      %v2020 = vpop.f32.mrb[0].mxu0
      %2021 = vmatprep.mubr.bf16.mxu0 0
      %2022 = vmatmul.mubr.bf16.gmra.mrb[0].mxu0 %v1969
      %v2023 = vpop.f32.mrb[0].mxu0
      %v2024 = vadd.f32 0.0, %v2023
      %v2025 = vpop.f32.mrb[0].mxu0
      %v2026 = vpop.f32.mrb[0].mxu0
      %v2027 = vadd.f32 0.0, %v2026
      %v2028 = vpop.f32.mrb[0].mxu0
      %2029 = vmatprep.mubr.bf16.mxu0 0
      %2030 = vmatmul.mubr.bf16.gmra.mrb[0].mxu0 %v1972
      %v2031 = vpop.f32.mrb[0].mxu0
      %v2032 = vadd.f32 0.0, %v2031
      %v2033 = vpop.f32.mrb[0].mxu0
      %v2034 = vpop.f32.mrb[0].mxu0
      %v2035 = vadd.f32 0.0, %v2034
      %v2036 = vpop.f32.mrb[0].mxu0
      %2037 = vmatprep.mubr.bf16.mxu0 0
      %2038 = vmatmul.mubr.bf16.gmra.mrb[0].mxu0 %v1975
      %v2039 = vpop.f32.mrb[0].mxu0
      %v2040 = vadd.f32 0.0, %v2039
      %v2041 = vpop.f32.mrb[0].mxu0
      %v2042 = vpop.f32.mrb[0].mxu0
      %v2043 = vadd.f32 0.0, %v2042
      %v2044 = vpop.f32.mrb[0].mxu0
      %2045 = vdwg.mxu0
      %vm2046 = vcmask 130048
      %2047 = vst.msk [vmem:[%s209] sm:$0xff] %vm2046, %v2016
      %2048 = vst.msk [vmem:[%s209 + $0x8] sm:$0xff] %vm2046, %v2019
      %2049 = vst.msk [vmem:[%s209 + $0x10] sm:$0xff] %vm2046, %v2024
      %2050 = vst.msk [vmem:[%s209 + $0x18] sm:$0xff] %vm2046, %v2027
      %2051 = vst.msk [vmem:[%s209 + $0x20] sm:$0xff] %vm2046, %v2032
      %2052 = vst.msk [vmem:[%s209 + $0x28] sm:$0xff] %vm2046, %v2035
      %2053 = vst.msk [vmem:[%s209 + $0x30] sm:$0xff] %vm2046, %v2040
      %2054 = vst.msk [vmem:[%s209 + $0x38] sm:$0xff] %vm2046, %v2043
      %v2055 = vsel %vm2046, %v2016, 0.0
      %v2056 = vsel %vm2046, %v2019, 0.0
      %v2057 = vadd.f32 %v2055, %v2056
      %v2058 = vsel %vm2046, %v2024, 0.0
      %v2059 = vadd.f32 %v2057, %v2058
      %v2060 = vsel %vm2046, %v2027, 0.0
      %v2061 = vadd.f32 %v2059, %v2060
      %v2062 = vsel %vm2046, %v2032, 0.0
      %v2063 = vadd.f32 %v2061, %v2062
      %v2064 = vsel %vm2046, %v2035, 0.0
      %v2065 = vadd.f32 %v2063, %v2064
      %v2066 = vsel %vm2046, %v2040, 0.0
      %v2067 = vadd.f32 %v2065, %v2066
      %v2068 = vsel %vm2046, %v2043, 0.0
      %v2069 = vadd.f32 %v2067, %v2068
      %v2070 = vrot.slane %v2069, 4
      %v2071 = vadd.f32 %v2069, %v2070
      %v2072 = vrot.slane %v2071, 2
      %v2073 = vadd.f32 %v2071, %v2072
      %v2074 = vrot.slane %v2073, 1
      %v2075 = vadd.f32 %v2073, %v2074
      %vm2076 = vcmask 122880
      %2077 = vst.msk [vmem:[%s213] sm:$0x1] %vm2076, %v2075
      %v2078 = vmul.f32 %v2016, %v2016
      %v2079 = vmul.f32 %v2019, %v2019
      %v2080 = vmul.f32 %v2024, %v2024
      %v2081 = vmul.f32 %v2027, %v2027
      %v2082 = vmul.f32 %v2032, %v2032
      %v2083 = vmul.f32 %v2035, %v2035
      %v2084 = vmul.f32 %v2040, %v2040
      %v2085 = vmul.f32 %v2043, %v2043
      %v2086 = vsel %vm2046, %v2078, 0.0
      %v2087 = vsel %vm2046, %v2079, 0.0
      %v2088 = vadd.f32 %v2086, %v2087
      %v2089 = vsel %vm2046, %v2080, 0.0
      %v2090 = vadd.f32 %v2088, %v2089
      %v2091 = vsel %vm2046, %v2081, 0.0
      %v2092 = vadd.f32 %v2090, %v2091
      %v2093 = vsel %vm2046, %v2082, 0.0
      %v2094 = vadd.f32 %v2092, %v2093
      %v2095 = vsel %vm2046, %v2083, 0.0
      %v2096 = vadd.f32 %v2094, %v2095
      %v2097 = vsel %vm2046, %v2084, 0.0
      %v2098 = vadd.f32 %v2096, %v2097
      %v2099 = vsel %vm2046, %v2085, 0.0
      %v2100 = vadd.f32 %v2098, %v2099
      %v2101 = vrot.slane %v2100, 4
      %v2102 = vadd.f32 %v2100, %v2101
      %v2103 = vrot.slane %v2102, 2
      %v2104 = vadd.f32 %v2102, %v2103
      %v2105 = vrot.slane %v2104, 1
      %v2106 = vadd.f32 %v2104, %v2105
      %2107 = vst.msk [vmem:[%s213 + $0x1] sm:$0x1] %vm2076, %v2106
      %p2108 = scmp.lt.s32.totalorder %s16, 1
      %s2109 = scalar_select %p2108, %s16, 1
      %s2110 = smul.addr %s2109, 8
      %s2111 = smul.addr %s2110, 8
      %s2112 = scalar_lea.vmem %s3, %s2111
      %p2113 = scmp.lt.s32.totalorder %s16, 1
      %s2114 = scalar_select %p2113, %s16, 1
      %s2115 = smul.addr %s2114, 2
      %s2116 = scalar_lea.vmem %s4, %s2115
      // Predicated region
      $region33: #{unet_innermost_forward.2} parent=31 // pred_check
        %p2117 = pneg %p102
      $region34: #{unet_innermost_forward.2} parent=31 // pred_check_branch
        %2119 = sbr.rel (%p2117) target = $region36
      $region35: #{unet_innermost_forward.2} parent=31 // pred_region
        _
      $region36: #{unet_innermost_forward.2} parent=31 // pred_fallthru
        _
      // Predicated region
      $region37: #{unet_innermost_forward.2} parent=31 // pred_check
        %p2120 = pneg %p128
      $region38: #{unet_innermost_forward.2} parent=31 // pred_check_branch
        %2122 = sbr.rel (%p2120) target = $region40
      $region39: #{unet_innermost_forward.2} parent=31 // pred_region
        _
      $region40: #{unet_innermost_forward.2} parent=31 // pred_fallthru
        _
    $region32: #{unet_innermost_forward.2} parent=5 // pred_fallthru
      _
    %p2123 = scmp.le.s32.totalorder 2, %s11
    // Predicated region
    $region41: #{unet_innermost_forward.2} parent=5 // pred_check
      %p2124 = pneg %p2123
    $region42: #{unet_innermost_forward.2} parent=5 // pred_check_branch
      %2126 = sbr.rel (%p2124) target = $region44
    $region43: #{unet_innermost_forward.2} parent=5 // pred_region
      %s2127 = ssub.s32 %s11, 2
      // Predicated region
      $region45: #{unet_innermost_forward.2} parent=43 // pred_check
        %p2128 = pneg %p108
      $region46: #{unet_innermost_forward.2} parent=43 // pred_check_branch
        %2130 = sbr.rel (%p2128) target = $region48
      $region47: #{unet_innermost_forward.2} parent=43 // pred_region
        %p2131 = scmp.lt.s32.totalorder %s17, 1
        %s2132 = scalar_select %p2131, %s17, 1
        %s2133 = smul.addr %s2132, 8
        %s2134 = smul.addr %s2133, 8
        %s2135 = scalar_lea.vmem %s3, %s2134
      $region48: #{unet_innermost_forward.2} parent=43 // pred_fallthru
        _
      // Predicated region
      $region49: #{unet_innermost_forward.2} parent=43 // pred_check
        %p2136 = pneg %p134
      $region50: #{unet_innermost_forward.2} parent=43 // pred_check_branch
        %2138 = sbr.rel (%p2136) target = $region52
      $region51: #{unet_innermost_forward.2} parent=43 // pred_region
        %p2139 = scmp.lt.s32.totalorder %s17, 1
        %s2140 = scalar_select %p2139, %s17, 1
        %s2141 = smul.addr %s2140, 2
        %s2142 = scalar_lea.vmem %s4, %s2141
      $region52: #{unet_innermost_forward.2} parent=43 // pred_fallthru
        _
    $region44: #{unet_innermost_forward.2} parent=5 // pred_fallthru
      _
  $region6: #{unet_innermost_forward.2} parent=0 // loop_footer
    %s15 = sadd.s32 1, %s11
  $region7: #{unet_innermost_forward.2} parent=0 // loop_footer_branch
    %10 = sbr.rel target = $region3
  $region8: #{unet_innermost_forward.2} parent=0 // loop_exit
    _

</llo_original>
